<compile_context>
chip_gen: v7x
topology: tpu7x:2x2x1
jax: 0.10.0
libtpu: 0.0.40
codegen_flags: <defaults>
</compile_context>

<pallas_src>
import functools

import numpy as np
import jax
import jax.numpy as jnp
from jax.experimental import pallas as pl
from jax.experimental.pallas import tpu as pltpu

EPS = 1e-5
LANE = 128     # lane width; only channel dims larger than this get padded
_COL0 = 8      # sublane-aligned column offset of the h1 interior in scratch


def _round_up(x, m):
    return (x + m - 1) // m * m


def _pad_dim(c):
    # Small channel counts stay unpadded (block == full array dims is legal);
    # padding e.g. 64->128 would inflate conv2 MACs 4x on MXU-bound v5e.
    return c if c <= LANE else _round_up(c, LANE)


def _vmem_limit_bytes():
    # Raise the scoped-VMEM cap (default 16/32 MiB) so a whole image fits on
    # v5e/v6e, but clamp against physical capacity so v7x (64 MiB) still lowers.
    try:
        phys = pltpu.get_tpu_info().vmem_capacity_bytes
    except Exception:
        phys = 64 * 1024 * 1024
    return int(min(100 * 1024 * 1024, (phys * 3) // 4))


# ----------------------------------------------------------------------------
# Fused bottleneck kernel.  One grid step = one image, spatial flattened to
# (M=H*W, C).  h1 is staged zero-padded in a bf16 VMEM scratch so the 3x3 conv
# becomes 9 shifted-view matmuls -- no HBM round trip for intermediates.
# ----------------------------------------------------------------------------
def _bottleneck_kernel(x_ref, w1_ref, b1_ref, w2_ref, b2_ref,
                       w3_ref, b3_ref, o_ref, h1p_ref, *, H, W):
    M = H * W
    P = w1_ref.shape[1]
    SW = h1p_ref.shape[1]
    cdt = h1p_ref.dtype                               # MXU compute dtype (bf16)

    x2d = x_ref[0]                                    # (M, Cin) bf16

    # ---- conv1 (1x1, BN scale folded into w1) + bias + relu -----------------
    h1 = jnp.dot(x2d, w1_ref[...], preferred_element_type=jnp.float32)
    h1 = jnp.maximum(h1 + b1_ref[...], 0.0)

    # ---- stage h1 (bf16) in the zero-padded VMEM scratch ---------------------
    # Only the 1-pixel border the 3x3 taps actually read is (re)zeroed each
    # step; the interior is fully overwritten.  (Zeroing every step keeps this
    # correct even when the "parallel" batch axis is sharded across cores.)
    zrow = jnp.zeros((1, SW, P), cdt)
    h1p_ref[0:1, :, :] = zrow                                   # top pad row
    h1p_ref[H + 1:H + 2, :, :] = zrow                           # bottom pad row
    zcol = jnp.zeros((H, 1, P), cdt)
    h1p_ref[1:H + 1, _COL0 - 1:_COL0, :] = zcol                 # left pad col
    h1p_ref[1:H + 1, _COL0 + W:_COL0 + W + 1, :] = zcol         # right pad col
    h1p_ref[1:H + 1, _COL0:_COL0 + W, :] = h1.astype(cdt).reshape(H, W, P)

    # ---- conv2 (3x3, pad=1, stride=1, BN scale folded into w2) + bias + relu
    # 9 shifted views of the padded scratch, each an (M,P) x (P,P) MXU matmul,
    # accumulated in f32; accumulator initialised from the first tap.
    # TODO(synk): the dx!=1 taps start at a sublane-misaligned column and get
    # relayouted (VMEM copies) before the MXU; a flat (H*SW, P) windowing
    # scheme would avoid the copies at the cost of ~SW/W extra MACs.
    acc = None
    for dy in range(3):
        for dx in range(3):
            c0 = _COL0 - 1 + dx
            tap = h1p_ref[dy:dy + H, c0:c0 + W, :].reshape(M, P)
            part = jnp.dot(tap, w2_ref[dy * 3 + dx],
                           preferred_element_type=jnp.float32)
            acc = part if acc is None else acc + part
    h2 = jnp.maximum(acc + b2_ref[...], 0.0)

    # ---- conv3 (1x1, BN scale folded into w3) + bias + residual + relu ------
    y = jnp.dot(h2.astype(cdt), w3_ref[...], preferred_element_type=jnp.float32)
    y = y + b3_ref[...] + x2d.astype(jnp.float32)     # bf16-precision skip path
    o_ref[0] = jnp.maximum(y, 0.0).astype(o_ref.dtype)            # bf16 store


def _fused_bottleneck(x_flat, p, H, W):
    """x_flat: (N, H*W, Cin_p) in the compute dtype; p: prepared params."""
    N, M, Cin_p = x_flat.shape
    P = p["w1"].shape[1]
    Co_p = p["w3"].shape[1]
    cdt = p["w1"].dtype
    SW = _round_up(_COL0 + W + 1, 8)                  # >=1 zero col each side

    kernel = functools.partial(_bottleneck_kernel, H=H, W=W)
    return pl.pallas_call(
        kernel,
        out_shape=jax.ShapeDtypeStruct((N, M, Co_p), cdt),        # bf16 output
        grid=(N,),
        in_specs=[
            pl.BlockSpec((1, M, Cin_p), lambda n: (n, 0, 0)),
            pl.BlockSpec((Cin_p, P), lambda n: (0, 0)),
            pl.BlockSpec((1, P), lambda n: (0, 0)),
            pl.BlockSpec((9, P, P), lambda n: (0, 0, 0)),
            pl.BlockSpec((1, P), lambda n: (0, 0)),
            pl.BlockSpec((P, Co_p), lambda n: (0, 0)),
            pl.BlockSpec((1, Co_p), lambda n: (0, 0)),
        ],
        out_specs=pl.BlockSpec((1, M, Co_p), lambda n: (n, 0, 0)),
        scratch_shapes=[pltpu.VMEM((H + 2, SW, P), cdt)],         # bf16 scratch
        compiler_params=pltpu.CompilerParams(
            dimension_semantics=("parallel",),        # batch -> 2 TCs on v7x
            vmem_limit_bytes=_vmem_limit_bytes()),
    )(x_flat, p["w1"], p["b1"], p["w2"], p["b2"], p["w3"], p["b3"])


# ----------------------------------------------------------------------------
# Forward wrappers (dim_change=None path: stride=1, input_planes == 4*planes)
# ----------------------------------------------------------------------------
def bottleneck_forward_nhwc(x_nhwc, params):
    """Channels-last entry point (no layout transposes).  Inside a real NHWC
    network call this directly and keep the bf16 result for the next block."""
    N, H, W, C = x_nhwc.shape
    cin_p = params["w1"].shape[0]
    cdt = params["w1"].dtype
    x = x_nhwc.reshape(N, H * W, C)
    if cin_p != C:
        x = jnp.pad(x, ((0, 0), (0, 0), (0, cin_p - C)))
    x = x.astype(cdt)
    out = _fused_bottleneck(x, params, H, W)          # (N, H*W, Co_p) bf16
    return out[..., :C].reshape(N, H, W, C)


def bottleneck_forward(x_nchw, params, stride=1):
    if stride != 1:
        # TODO(synk): stride>1 / dim_change downsample projection not implemented.
        raise NotImplementedError("dim_change=None requires stride == 1")
    # The NCHW<->NHWC transposes exist only for drop-in parity with the PyTorch
    # module (extra HBM passes, flagged for v6e); prefer the NHWC entry point.
    x = jnp.transpose(x_nchw, (0, 2, 3, 1))           # NCHW -> NHWC
    out = bottleneck_forward_nhwc(x, params)          # bf16 NHWC
    return jnp.transpose(out, (0, 3, 1, 2))           # bf16 NCHW


# ----------------------------------------------------------------------------
# Deterministic parameter init, BN folding / weight prep, pure-JAX reference
# ----------------------------------------------------------------------------
def init_raw_params(key, input_planes, planes):
    expansion = 4
    ks = jax.random.split(key, 9)

    def nrm(k, shape, scale=0.1):
        return scale * jax.random.normal(k, shape, jnp.float32)

    w1_t = nrm(ks[0], (planes, input_planes, 1, 1))
    b1c = nrm(ks[1], (planes,))
    w2_t = nrm(ks[2], (planes, planes, 3, 3))
    b2c = nrm(ks[3], (planes,))
    w3_t = nrm(ks[4], (planes * expansion, planes, 1, 1))
    b3c = nrm(ks[5], (planes * expansion,))

    def bn_init(k, c):
        kg, kb, km, kv = jax.random.split(k, 4)
        gamma = 1.0 + 0.1 * jax.random.normal(kg, (c,), jnp.float32)
        beta = 0.1 * jax.random.normal(kb, (c,), jnp.float32)
        mean = 0.1 * jax.random.normal(km, (c,), jnp.float32)
        var = jnp.abs(jax.random.normal(kv, (c,), jnp.float32)) + 0.5
        return gamma, beta, mean, var

    return {
        "w1_t": w1_t, "b1c": b1c, "w2_t": w2_t, "b2c": b2c,
        "w3_t": w3_t, "b3c": b3c,
        "bn1": bn_init(ks[6], planes),
        "bn2": bn_init(ks[7], planes),
        "bn3": bn_init(ks[8], planes * expansion),
    }


def prepare_kernel_params(raw, compute_dtype=jnp.bfloat16):
    """Fold eval-mode BN into the conv weights (scale) and a per-channel bias,
    transpose the weights to matmul layout, pad only oversized channel dims,
    and cast the matmul operands to the MXU compute dtype (done once, offline)."""
    w1_t, w2_t, w3_t = raw["w1_t"], raw["w2_t"], raw["w3_t"]
    planes = w1_t.shape[0]
    cin = w1_t.shape[1]
    cout = w3_t.shape[0]
    assert cin == cout, "dim_change=None requires input_planes == 4*planes"

    cin_p = _pad_dim(cin)
    p_p = _pad_dim(planes)
    co_p = _pad_dim(cout)

    def fold(conv_bias, bn):
        gamma, beta, mean, var = bn
        s = gamma / jnp.sqrt(var + EPS)
        b = (conv_bias - mean) * s + beta
        return s, b

    s1, b1 = fold(raw["b1c"], raw["bn1"])
    s2, b2 = fold(raw["b2c"], raw["bn2"])
    s3, b3 = fold(raw["b3c"], raw["bn3"])

    def pad2(a, r, c):
        return jnp.pad(a, ((0, r - a.shape[0]), (0, c - a.shape[1])))

    def padv(v, c):
        return jnp.pad(v, (0, c - v.shape[0])).reshape(1, c)

    # BN scale folded into the weights per output channel, in f32, before the
    # one-time bf16 cast -> kernel epilogue is just bias (+residual) + ReLU.
    w1 = jnp.transpose(w1_t[:, :, 0, 0], (1, 0)) * s1[None, :]          # (Cin,P)
    w3 = jnp.transpose(w3_t[:, :, 0, 0], (1, 0)) * s3[None, :]          # (P,Co)
    w2 = jnp.transpose(w2_t, (2, 3, 1, 0)).reshape(9, planes, planes)   # (9,ci,co)
    w2 = w2 * s2[None, None, :]

    w1 = pad2(w1, cin_p, p_p)
    w3 = pad2(w3, p_p, co_p)
    w2 = jnp.pad(w2, ((0, 0), (0, p_p - planes), (0, p_p - planes)))

    return {
        "w1": w1.astype(compute_dtype),
        "w2": w2.astype(compute_dtype),
        "w3": w3.astype(compute_dtype),
        "b1": padv(b1, p_p), "b2": padv(b2, p_p), "b3": padv(b3, co_p),
    }


def reference_forward(x_nchw, raw, stride):
    """Pure-JAX NCHW f32 reference mirroring the PyTorch graph (eval-mode BN)."""
    x = x_nchw.astype(jnp.float32)

    def conv(h, w, b, s, pad):
        y = jax.lax.conv_general_dilated(
            h, w, (s, s), [(pad, pad), (pad, pad)],
            dimension_numbers=("NCHW", "OIHW", "NCHW"))
        return y + b[None, :, None, None]

    def bn(y, stats):
        g, be, m, v = stats
        return ((y - m[None, :, None, None])
                / jnp.sqrt(v[None, :, None, None] + EPS)
                * g[None, :, None, None] + be[None, :, None, None])

    res = x
    o = jax.nn.relu(bn(conv(x, raw["w1_t"], raw["b1c"], 1, 0), raw["bn1"]))
    o = jax.nn.relu(bn(conv(o, raw["w2_t"], raw["b2c"], stride, 1), raw["bn2"]))
    o = bn(conv(o, raw["w3_t"], raw["b3c"], 1, 0), raw["bn3"])
    return jax.nn.relu(o + res)


# ----------------------------------------------------------------------------
if __name__ == "__main__":
    planes = 16
    expansion = 4
    input_planes = planes * expansion   # dim_change=None -> residual must match
    N, H, W = 2, 8, 8
    stride = 1

    key = jax.random.PRNGKey(0)
    kx, kp = jax.random.split(key)
    x = jax.random.normal(kx, (N, input_planes, H, W), jnp.float32)  # NCHW

    raw = init_raw_params(kp, input_planes, planes)
    params = prepare_kernel_params(raw, compute_dtype=jnp.bfloat16)

    fwd = jax.jit(bottleneck_forward, static_argnames=("stride",))
    out = jax.block_until_ready(fwd(x, params, stride=stride))       # bf16 NCHW

    ref = reference_forward(x, raw, stride)
    # bf16 MXU operands + bf16 output vs. an all-f32 reference: bf16-level
    # tolerance.  A structural bug (wrong tap / transposed weight) is O(1) off.
    np.testing.assert_allclose(np.asarray(out.astype(jnp.float32)),
                               np.asarray(ref), rtol=5e-2, atol=5e-2)
    print("KERNEL_OK")
</pallas_src>

<mosaic_0001>
module attributes {stable_mosaic.version = 11 : i64} {
  func.func @_bottleneck_kernel(%arg0: i32, %arg1: memref<1x64x64xbf16, #tpu.memory_space<vmem>>, %arg2: memref<64x16xbf16, #tpu.memory_space<vmem>>, %arg3: memref<1x16xf32, #tpu.memory_space<vmem>>, %arg4: memref<9x16x16xbf16, #tpu.memory_space<vmem>>, %arg5: memref<1x16xf32, #tpu.memory_space<vmem>>, %arg6: memref<16x64xbf16, #tpu.memory_space<vmem>>, %arg7: memref<1x64xf32, #tpu.memory_space<vmem>>, %arg8: memref<1x64x64xbf16, #tpu.memory_space<vmem>>, %arg9: memref<10x24x16xbf16, #tpu.memory_space<vmem>>) attributes {dimension_semantics = [#tpu.dimension_semantics<parallel>], iteration_bounds = array<i64: 2>, scalar_prefetch = 0 : i64, scratch_operands = 1 : i64, tpu.core_type = #tpu.core_type<tc>, window_params = [{transform_indices = @transform_0, window_bounds = array<i64: 1, 64, 64>}, {pipeline_mode = #tpu.pipeline_mode<synchronous>, transform_indices = @transform_1, window_bounds = array<i64: 64, 16>}, {pipeline_mode = #tpu.pipeline_mode<synchronous>, transform_indices = @transform_2, window_bounds = array<i64: 1, 16>}, {pipeline_mode = #tpu.pipeline_mode<synchronous>, transform_indices = @transform_3, window_bounds = array<i64: 9, 16, 16>}, {pipeline_mode = #tpu.pipeline_mode<synchronous>, transform_indices = @transform_4, window_bounds = array<i64: 1, 16>}, {pipeline_mode = #tpu.pipeline_mode<synchronous>, transform_indices = @transform_5, window_bounds = array<i64: 16, 64>}, {pipeline_mode = #tpu.pipeline_mode<synchronous>, transform_indices = @transform_6, window_bounds = array<i64: 1, 64>}, {transform_indices = @transform_7, window_bounds = array<i64: 1, 64, 64>}]} {
    %c0 = arith.constant 0 : index
    %c0_0 = arith.constant 0 : index
    %c0_1 = arith.constant 0 : index
    %0 = vector.load %arg1[%c0, %c0_0, %c0_1] : memref<1x64x64xbf16, #tpu.memory_space<vmem>>, vector<1x64x64xbf16>
    %1 = vector.shape_cast %0 : vector<1x64x64xbf16> to vector<64x64xbf16>
    %c0_2 = arith.constant 0 : index
    %c0_3 = arith.constant 0 : index
    %2 = vector.load %arg2[%c0_2, %c0_3] : memref<64x16xbf16, #tpu.memory_space<vmem>>, vector<64x16xbf16>
    %cst = arith.constant dense<0.000000e+00> : vector<64x16xf32>
    %3 = tpu.matmul %1, %2, %cst {dimension_numbers = #tpu.dot_dimension_numbers<[1], [0], [0], [1], [0, 0, 1, 1], [], []>} : vector<64x64xbf16>, vector<64x16xbf16>, vector<64x16xf32> -> vector<64x16xf32>
    %c0_4 = arith.constant 0 : index
    %c0_5 = arith.constant 0 : index
    %4 = vector.load %arg3[%c0_4, %c0_5] : memref<1x16xf32, #tpu.memory_space<vmem>>, vector<1x16xf32>
    %5 = vector.broadcast %4 : vector<1x16xf32> to vector<64x16xf32>
    %6 = arith.addf %3, %5 : vector<64x16xf32>
    %cst_6 = arith.constant 0.000000e+00 : f32
    %7 = vector.broadcast %cst_6 : f32 to vector<64x16xf32>
    %8 = arith.maximumf %6, %7 : vector<64x16xf32>
    %cst_7 = arith.constant 0.000000e+00 : bf16
    %9 = vector.broadcast %cst_7 : bf16 to vector<1x24x16xbf16>
    %c0_8 = arith.constant 0 : index
    %c0_9 = arith.constant 0 : index
    %c0_10 = arith.constant 0 : index
    %10 = vector.load %arg9[%c0_8, %c0_9, %c0_10] : memref<10x24x16xbf16, #tpu.memory_space<vmem>>, vector<1x24x16xbf16>
    tpu.vector_store %arg9[%c0_8, %c0_9, %c0_10], %9 {strides = array<i32>} : memref<10x24x16xbf16, #tpu.memory_space<vmem>>, vector<1x24x16xbf16>,
    %c9 = arith.constant 9 : index
    %c0_11 = arith.constant 0 : index
    %c0_12 = arith.constant 0 : index
    %11 = vector.load %arg9[%c9, %c0_11, %c0_12] : memref<10x24x16xbf16, #tpu.memory_space<vmem>>, vector<1x24x16xbf16>
    tpu.vector_store %arg9[%c9, %c0_11, %c0_12], %9 {strides = array<i32>} : memref<10x24x16xbf16, #tpu.memory_space<vmem>>, vector<1x24x16xbf16>,
    %cst_13 = arith.constant 0.000000e+00 : bf16
    %12 = vector.broadcast %cst_13 : bf16 to vector<8x1x16xbf16>
    %c1 = arith.constant 1 : index
    %c7 = arith.constant 7 : index
    %c0_14 = arith.constant 0 : index
    %13 = vector.load %arg9[%c1, %c7, %c0_14] : memref<10x24x16xbf16, #tpu.memory_space<vmem>>, vector<8x1x16xbf16>
    tpu.vector_store %arg9[%c1, %c7, %c0_14], %12 {strides = array<i32>} : memref<10x24x16xbf16, #tpu.memory_space<vmem>>, vector<8x1x16xbf16>,
    %c1_15 = arith.constant 1 : index
    %c16 = arith.constant 16 : index
    %c0_16 = arith.constant 0 : index
    %14 = vector.load %arg9[%c1_15, %c16, %c0_16] : memref<10x24x16xbf16, #tpu.memory_space<vmem>>, vector<8x1x16xbf16>
    tpu.vector_store %arg9[%c1_15, %c16, %c0_16], %12 {strides = array<i32>} : memref<10x24x16xbf16, #tpu.memory_space<vmem>>, vector<8x1x16xbf16>,
    %15 = arith.truncf %8 : vector<64x16xf32> to vector<64x16xbf16>
    %16 = vector.shape_cast %15 : vector<64x16xbf16> to vector<8x8x16xbf16>
    %c1_17 = arith.constant 1 : index
    %c8 = arith.constant 8 : index
    %c0_18 = arith.constant 0 : index
    %17 = vector.load %arg9[%c1_17, %c8, %c0_18] : memref<10x24x16xbf16, #tpu.memory_space<vmem>>, vector<8x8x16xbf16>
    tpu.vector_store %arg9[%c1_17, %c8, %c0_18], %16 {strides = array<i32>} : memref<10x24x16xbf16, #tpu.memory_space<vmem>>, vector<8x8x16xbf16>,
    %c0_19 = arith.constant 0 : index
    %c7_20 = arith.constant 7 : index
    %c0_21 = arith.constant 0 : index
    %18 = vector.load %arg9[%c0_19, %c7_20, %c0_21] : memref<10x24x16xbf16, #tpu.memory_space<vmem>>, vector<8x8x16xbf16>
    %19 = vector.shape_cast %18 : vector<8x8x16xbf16> to vector<64x16xbf16>
    %c0_22 = arith.constant 0 : index
    %c0_23 = arith.constant 0 : index
    %c0_24 = arith.constant 0 : index
    %20 = vector.load %arg4[%c0_22, %c0_23, %c0_24] : memref<9x16x16xbf16, #tpu.memory_space<vmem>>, vector<1x16x16xbf16>
    %21 = vector.shape_cast %20 : vector<1x16x16xbf16> to vector<16x16xbf16>
    %cst_25 = arith.constant dense<0.000000e+00> : vector<64x16xf32>
    %22 = tpu.matmul %19, %21, %cst_25 {dimension_numbers = #tpu.dot_dimension_numbers<[1], [0], [0], [1], [0, 0, 1, 1], [], []>} : vector<64x16xbf16>, vector<16x16xbf16>, vector<64x16xf32> -> vector<64x16xf32>
    %c0_26 = arith.constant 0 : index
    %c8_27 = arith.constant 8 : index
    %c0_28 = arith.constant 0 : index
    %23 = vector.load %arg9[%c0_26, %c8_27, %c0_28] : memref<10x24x16xbf16, #tpu.memory_space<vmem>>, vector<8x8x16xbf16>
    %24 = vector.shape_cast %23 : vector<8x8x16xbf16> to vector<64x16xbf16>
    %c1_29 = arith.constant 1 : index
    %c0_30 = arith.constant 0 : index
    %c0_31 = arith.constant 0 : index
    %25 = vector.load %arg4[%c1_29, %c0_30, %c0_31] : memref<9x16x16xbf16, #tpu.memory_space<vmem>>, vector<1x16x16xbf16>
    %26 = vector.shape_cast %25 : vector<1x16x16xbf16> to vector<16x16xbf16>
    %cst_32 = arith.constant dense<0.000000e+00> : vector<64x16xf32>
    %27 = tpu.matmul %24, %26, %cst_32 {dimension_numbers = #tpu.dot_dimension_numbers<[1], [0], [0], [1], [0, 0, 1, 1], [], []>} : vector<64x16xbf16>, vector<16x16xbf16>, vector<64x16xf32> -> vector<64x16xf32>
    %28 = arith.addf %22, %27 : vector<64x16xf32>
    %c0_33 = arith.constant 0 : index
    %c9_34 = arith.constant 9 : index
    %c0_35 = arith.constant 0 : index
    %29 = vector.load %arg9[%c0_33, %c9_34, %c0_35] : memref<10x24x16xbf16, #tpu.memory_space<vmem>>, vector<8x8x16xbf16>
    %30 = vector.shape_cast %29 : vector<8x8x16xbf16> to vector<64x16xbf16>
    %c2 = arith.constant 2 : index
    %c0_36 = arith.constant 0 : index
    %c0_37 = arith.constant 0 : index
    %31 = vector.load %arg4[%c2, %c0_36, %c0_37] : memref<9x16x16xbf16, #tpu.memory_space<vmem>>, vector<1x16x16xbf16>
    %32 = vector.shape_cast %31 : vector<1x16x16xbf16> to vector<16x16xbf16>
    %cst_38 = arith.constant dense<0.000000e+00> : vector<64x16xf32>
    %33 = tpu.matmul %30, %32, %cst_38 {dimension_numbers = #tpu.dot_dimension_numbers<[1], [0], [0], [1], [0, 0, 1, 1], [], []>} : vector<64x16xbf16>, vector<16x16xbf16>, vector<64x16xf32> -> vector<64x16xf32>
    %34 = arith.addf %28, %33 : vector<64x16xf32>
    %c1_39 = arith.constant 1 : index
    %c7_40 = arith.constant 7 : index
    %c0_41 = arith.constant 0 : index
    %35 = vector.load %arg9[%c1_39, %c7_40, %c0_41] : memref<10x24x16xbf16, #tpu.memory_space<vmem>>, vector<8x8x16xbf16>
    %36 = vector.shape_cast %35 : vector<8x8x16xbf16> to vector<64x16xbf16>
    %c3 = arith.constant 3 : index
    %c0_42 = arith.constant 0 : index
    %c0_43 = arith.constant 0 : index
    %37 = vector.load %arg4[%c3, %c0_42, %c0_43] : memref<9x16x16xbf16, #tpu.memory_space<vmem>>, vector<1x16x16xbf16>
    %38 = vector.shape_cast %37 : vector<1x16x16xbf16> to vector<16x16xbf16>
    %cst_44 = arith.constant dense<0.000000e+00> : vector<64x16xf32>
    %39 = tpu.matmul %36, %38, %cst_44 {dimension_numbers = #tpu.dot_dimension_numbers<[1], [0], [0], [1], [0, 0, 1, 1], [], []>} : vector<64x16xbf16>, vector<16x16xbf16>, vector<64x16xf32> -> vector<64x16xf32>
    %40 = arith.addf %34, %39 : vector<64x16xf32>
    %c1_45 = arith.constant 1 : index
    %c8_46 = arith.constant 8 : index
    %c0_47 = arith.constant 0 : index
    %41 = vector.load %arg9[%c1_45, %c8_46, %c0_47] : memref<10x24x16xbf16, #tpu.memory_space<vmem>>, vector<8x8x16xbf16>
    %42 = vector.shape_cast %41 : vector<8x8x16xbf16> to vector<64x16xbf16>
    %c4 = arith.constant 4 : index
    %c0_48 = arith.constant 0 : index
    %c0_49 = arith.constant 0 : index
    %43 = vector.load %arg4[%c4, %c0_48, %c0_49] : memref<9x16x16xbf16, #tpu.memory_space<vmem>>, vector<1x16x16xbf16>
    %44 = vector.shape_cast %43 : vector<1x16x16xbf16> to vector<16x16xbf16>
    %cst_50 = arith.constant dense<0.000000e+00> : vector<64x16xf32>
    %45 = tpu.matmul %42, %44, %cst_50 {dimension_numbers = #tpu.dot_dimension_numbers<[1], [0], [0], [1], [0, 0, 1, 1], [], []>} : vector<64x16xbf16>, vector<16x16xbf16>, vector<64x16xf32> -> vector<64x16xf32>
    %46 = arith.addf %40, %45 : vector<64x16xf32>
    %c1_51 = arith.constant 1 : index
    %c9_52 = arith.constant 9 : index
    %c0_53 = arith.constant 0 : index
    %47 = vector.load %arg9[%c1_51, %c9_52, %c0_53] : memref<10x24x16xbf16, #tpu.memory_space<vmem>>, vector<8x8x16xbf16>
    %48 = vector.shape_cast %47 : vector<8x8x16xbf16> to vector<64x16xbf16>
    %c5 = arith.constant 5 : index
    %c0_54 = arith.constant 0 : index
    %c0_55 = arith.constant 0 : index
    %49 = vector.load %arg4[%c5, %c0_54, %c0_55] : memref<9x16x16xbf16, #tpu.memory_space<vmem>>, vector<1x16x16xbf16>
    %50 = vector.shape_cast %49 : vector<1x16x16xbf16> to vector<16x16xbf16>
    %cst_56 = arith.constant dense<0.000000e+00> : vector<64x16xf32>
    %51 = tpu.matmul %48, %50, %cst_56 {dimension_numbers = #tpu.dot_dimension_numbers<[1], [0], [0], [1], [0, 0, 1, 1], [], []>} : vector<64x16xbf16>, vector<16x16xbf16>, vector<64x16xf32> -> vector<64x16xf32>
    %52 = arith.addf %46, %51 : vector<64x16xf32>
    %c2_57 = arith.constant 2 : index
    %c7_58 = arith.constant 7 : index
    %c0_59 = arith.constant 0 : index
    %53 = vector.load %arg9[%c2_57, %c7_58, %c0_59] : memref<10x24x16xbf16, #tpu.memory_space<vmem>>, vector<8x8x16xbf16>
    %54 = vector.shape_cast %53 : vector<8x8x16xbf16> to vector<64x16xbf16>
    %c6 = arith.constant 6 : index
    %c0_60 = arith.constant 0 : index
    %c0_61 = arith.constant 0 : index
    %55 = vector.load %arg4[%c6, %c0_60, %c0_61] : memref<9x16x16xbf16, #tpu.memory_space<vmem>>, vector<1x16x16xbf16>
    %56 = vector.shape_cast %55 : vector<1x16x16xbf16> to vector<16x16xbf16>
    %cst_62 = arith.constant dense<0.000000e+00> : vector<64x16xf32>
    %57 = tpu.matmul %54, %56, %cst_62 {dimension_numbers = #tpu.dot_dimension_numbers<[1], [0], [0], [1], [0, 0, 1, 1], [], []>} : vector<64x16xbf16>, vector<16x16xbf16>, vector<64x16xf32> -> vector<64x16xf32>
    %58 = arith.addf %52, %57 : vector<64x16xf32>
    %c2_63 = arith.constant 2 : index
    %c8_64 = arith.constant 8 : index
    %c0_65 = arith.constant 0 : index
    %59 = vector.load %arg9[%c2_63, %c8_64, %c0_65] : memref<10x24x16xbf16, #tpu.memory_space<vmem>>, vector<8x8x16xbf16>
    %60 = vector.shape_cast %59 : vector<8x8x16xbf16> to vector<64x16xbf16>
    %c7_66 = arith.constant 7 : index
    %c0_67 = arith.constant 0 : index
    %c0_68 = arith.constant 0 : index
    %61 = vector.load %arg4[%c7_66, %c0_67, %c0_68] : memref<9x16x16xbf16, #tpu.memory_space<vmem>>, vector<1x16x16xbf16>
    %62 = vector.shape_cast %61 : vector<1x16x16xbf16> to vector<16x16xbf16>
    %cst_69 = arith.constant dense<0.000000e+00> : vector<64x16xf32>
    %63 = tpu.matmul %60, %62, %cst_69 {dimension_numbers = #tpu.dot_dimension_numbers<[1], [0], [0], [1], [0, 0, 1, 1], [], []>} : vector<64x16xbf16>, vector<16x16xbf16>, vector<64x16xf32> -> vector<64x16xf32>
    %64 = arith.addf %58, %63 : vector<64x16xf32>
    %c2_70 = arith.constant 2 : index
    %c9_71 = arith.constant 9 : index
    %c0_72 = arith.constant 0 : index
    %65 = vector.load %arg9[%c2_70, %c9_71, %c0_72] : memref<10x24x16xbf16, #tpu.memory_space<vmem>>, vector<8x8x16xbf16>
    %66 = vector.shape_cast %65 : vector<8x8x16xbf16> to vector<64x16xbf16>
    %c8_73 = arith.constant 8 : index
    %c0_74 = arith.constant 0 : index
    %c0_75 = arith.constant 0 : index
    %67 = vector.load %arg4[%c8_73, %c0_74, %c0_75] : memref<9x16x16xbf16, #tpu.memory_space<vmem>>, vector<1x16x16xbf16>
    %68 = vector.shape_cast %67 : vector<1x16x16xbf16> to vector<16x16xbf16>
    %cst_76 = arith.constant dense<0.000000e+00> : vector<64x16xf32>
    %69 = tpu.matmul %66, %68, %cst_76 {dimension_numbers = #tpu.dot_dimension_numbers<[1], [0], [0], [1], [0, 0, 1, 1], [], []>} : vector<64x16xbf16>, vector<16x16xbf16>, vector<64x16xf32> -> vector<64x16xf32>
    %70 = arith.addf %64, %69 : vector<64x16xf32>
    %c0_77 = arith.constant 0 : index
    %c0_78 = arith.constant 0 : index
    %71 = vector.load %arg5[%c0_77, %c0_78] : memref<1x16xf32, #tpu.memory_space<vmem>>, vector<1x16xf32>
    %72 = vector.broadcast %71 : vector<1x16xf32> to vector<64x16xf32>
    %73 = arith.addf %70, %72 : vector<64x16xf32>
    %cst_79 = arith.constant 0.000000e+00 : f32
    %74 = vector.broadcast %cst_79 : f32 to vector<64x16xf32>
    %75 = arith.maximumf %73, %74 : vector<64x16xf32>
    %76 = arith.truncf %75 : vector<64x16xf32> to vector<64x16xbf16>
    %c0_80 = arith.constant 0 : index
    %c0_81 = arith.constant 0 : index
    %77 = vector.load %arg6[%c0_80, %c0_81] : memref<16x64xbf16, #tpu.memory_space<vmem>>, vector<16x64xbf16>
    %cst_82 = arith.constant dense<0.000000e+00> : vector<64x64xf32>
    %78 = tpu.matmul %76, %77, %cst_82 {dimension_numbers = #tpu.dot_dimension_numbers<[1], [0], [0], [1], [0, 0, 1, 1], [], []>} : vector<64x16xbf16>, vector<16x64xbf16>, vector<64x64xf32> -> vector<64x64xf32>
    %c0_83 = arith.constant 0 : index
    %c0_84 = arith.constant 0 : index
    %79 = vector.load %arg7[%c0_83, %c0_84] : memref<1x64xf32, #tpu.memory_space<vmem>>, vector<1x64xf32>
    %80 = vector.broadcast %79 : vector<1x64xf32> to vector<64x64xf32>
    %81 = arith.addf %78, %80 : vector<64x64xf32>
    %82 = arith.extf %1 : vector<64x64xbf16> to vector<64x64xf32>
    %83 = arith.addf %81, %82 : vector<64x64xf32>
    %cst_85 = arith.constant 0.000000e+00 : f32
    %84 = vector.broadcast %cst_85 : f32 to vector<64x64xf32>
    %85 = arith.maximumf %83, %84 : vector<64x64xf32>
    %86 = arith.truncf %85 : vector<64x64xf32> to vector<64x64xbf16>
    %c0_86 = arith.constant 0 : index
    %c0_87 = arith.constant 0 : index
    %c0_88 = arith.constant 0 : index
    %87 = vector.load %arg8[%c0_86, %c0_87, %c0_88] : memref<1x64x64xbf16, #tpu.memory_space<vmem>>, vector<1x64x64xbf16>
    %88 = vector.shape_cast %87 : vector<1x64x64xbf16> to vector<64x64xbf16>
    %89 = vector.shape_cast %86 : vector<64x64xbf16> to vector<1x64x64xbf16>
    tpu.vector_store %arg8[%c0_86, %c0_87, %c0_88], %89 {strides = array<i32>} : memref<1x64x64xbf16, #tpu.memory_space<vmem>>, vector<1x64x64xbf16>,
    return
  }
  func.func @transform_0(%arg0: i32) -> (i32, i32, i32) {
    %c0_i32 = arith.constant 0 : i32
    %c0_i32_0 = arith.constant 0 : i32
    %c0_i32_1 = arith.constant 0 : i32
    return %arg0, %c0_i32, %c0_i32_0 : i32, i32, i32
  }
  func.func @transform_1(%arg0: i32) -> (i32, i32) {
    %c0_i32 = arith.constant 0 : i32
    %c0_i32_0 = arith.constant 0 : i32
    %c0_i32_1 = arith.constant 0 : i32
    return %c0_i32, %c0_i32_0 : i32, i32
  }
  func.func @transform_2(%arg0: i32) -> (i32, i32) {
    %c0_i32 = arith.constant 0 : i32
    %c0_i32_0 = arith.constant 0 : i32
    %c0_i32_1 = arith.constant 0 : i32
    return %c0_i32, %c0_i32_0 : i32, i32
  }
  func.func @transform_3(%arg0: i32) -> (i32, i32, i32) {
    %c0_i32 = arith.constant 0 : i32
    %c0_i32_0 = arith.constant 0 : i32
    %c0_i32_1 = arith.constant 0 : i32
    %c0_i32_2 = arith.constant 0 : i32
    return %c0_i32, %c0_i32_0, %c0_i32_1 : i32, i32, i32
  }
  func.func @transform_4(%arg0: i32) -> (i32, i32) {
    %c0_i32 = arith.constant 0 : i32
    %c0_i32_0 = arith.constant 0 : i32
    %c0_i32_1 = arith.constant 0 : i32
    return %c0_i32, %c0_i32_0 : i32, i32
  }
  func.func @transform_5(%arg0: i32) -> (i32, i32) {
    %c0_i32 = arith.constant 0 : i32
    %c0_i32_0 = arith.constant 0 : i32
    %c0_i32_1 = arith.constant 0 : i32
    return %c0_i32, %c0_i32_0 : i32, i32
  }
  func.func @transform_6(%arg0: i32) -> (i32, i32) {
    %c0_i32 = arith.constant 0 : i32
    %c0_i32_0 = arith.constant 0 : i32
    %c0_i32_1 = arith.constant 0 : i32
    return %c0_i32, %c0_i32_0 : i32, i32
  }
  func.func @transform_7(%arg0: i32) -> (i32, i32, i32) {
    %c0_i32 = arith.constant 0 : i32
    %c0_i32_0 = arith.constant 0 : i32
    %c0_i32_1 = arith.constant 0 : i32
    return %arg0, %c0_i32, %c0_i32_0 : i32, i32, i32
  }
}

</mosaic_0001>

<llo_original>
// kernel: bottleneck_forward.1
$region0: #{bottleneck_forward.1}
  #allocation0 [shape = 'u32[]', space=smem, size = 0x4, offset = 0x4, fixed_abs, tag = 'smem constant byte address 0x4 - core index']
  #allocation1 [shape = 'u32[144,128]{1,0:T(1,128)}', space=vmem, size = 0x12000, scoped, tag = 'internal scratch']
  #allocation2 [shape = 'bf16[10,24,16]{2,1,0:T(8,128)(2,1)}', space=vmem, size = 0xf000, scoped, tag = 'scratch operand']
  %s0 = inlined_call_operand.vmem [shape: bf16[2,64,64], index: 0, kind: input, shape index: {}]
  %s1 = inlined_call_operand.vmem [shape: bf16[64,16], index: 1, kind: input, shape index: {}]
  %s2 = inlined_call_operand.vmem [shape: f32[1,16], index: 2, kind: input, shape index: {}]
  %s3 = inlined_call_operand.vmem [shape: bf16[9,16,16], index: 3, kind: input, shape index: {}]
  %s4 = inlined_call_operand.vmem [shape: f32[1,16], index: 4, kind: input, shape index: {}]
  %s5 = inlined_call_operand.vmem [shape: bf16[16,64], index: 5, kind: input, shape index: {}]
  %s6 = inlined_call_operand.vmem [shape: f32[1,64], index: 6, kind: input, shape index: {}]
  %s7 = inlined_call_operand.hbm [shape: bf16[2,64,64], index: 7, kind: output, shape index: {}]
  %s8 = sld [smem:[#allocation0]]
  $region61: #{bottleneck_forward.1} parent=0
    _
  %s10 = ssub.s32 1, %s8
  %s11 = scalar_select 0, %s10, %s8
  $region1: #{bottleneck_forward.1} parent=0
    #allocation3 [shape = 'u8[32768]{0}', space=vmem, size = 0x8000, scoped, tag = 'output window, operand 0']
    #allocation4 [shape = 's32[2]{0}', space=sflag, size = 0x8, scoped, tag = 'scoped memory for bottleneck_forward.1']
    %12 = vsyncpa [#allocation4], 0
    %s13 = scalar_lea.sflag [#allocation4], 1
    %14 = vsyncpa %s13, 0
    loop: start=0, step=1, limit=4
    $region2: #{bottleneck_forward.1} parent=1 // loop_pre_header
      _
    $region3: #{bottleneck_forward.1} parent=1 // loop_header
      %s16 = sphi 0, %s20
      %p17 = scmp.ge.s32.totalorder %s16, 4
      %s26 = sphi 0, %s28
      %s29 = sphi 0, %s26
      %s30 = sphi 0, %s29
      %s46 = sphi 0, %s30
      %s50 = sphi 0, %s50
      %s52 = sphi 0, %s50
      %s53 = sphi 0, %s52
      %s67 = sphi 0, %s53
      %s71 = sphi 0, %s71
      %s73 = sphi 0, %s71
      %s74 = sphi 0, %s73
      %s88 = sphi 0, %s74
      %s92 = sphi 0, %s92
      %s94 = sphi 0, %s92
      %s95 = sphi 0, %s94
      %s109 = sphi 0, %s95
      %s113 = sphi 0, %s113
      %s115 = sphi 0, %s113
      %s116 = sphi 0, %s115
      %s130 = sphi 0, %s116
      %s134 = sphi 0, %s134
      %s136 = sphi 0, %s134
      %s137 = sphi 0, %s136
      %s151 = sphi 0, %s137
      %s155 = sphi 0, %s155
      %s157 = sphi 0, %s155
      %s158 = sphi 0, %s157
      %s172 = sphi 0, %s158
      %s178 = sphi 0, %s180
      %s181 = sphi 0, %s178
      %s182 = sphi 0, %s181
      %s198 = sphi 0, %s182
    $region4: #{bottleneck_forward.1} parent=1 // loop_header_branch
      %19 = sbr.rel (%p17) target = $region8
    $region5: #{bottleneck_forward.1} parent=1 // loop_body
      %s21 = ssub.s32 %s16, 1
      %s22 = ssub.s32 %s16, 2
      %s23 = sadd.s32 %s16, 1
      %s24 = ssub.s32 %s16, %s23
      %p25 = scmp.eq.s32.totalorder %s24, 0
      %s27 = sadd.s32 %s26, 1
      %s28 = scalar_select %p25, %s26, %s27
      %p31 = pneg %p25
      %p32 = scmp.eq.s32.totalorder %s16, 1
      %p33 = por %p31, %p32
      %p34 = scmp.ne.s32.totalorder %s26, %s29
      %p35 = scmp.eq.s32.totalorder %s16, 0
      %p36 = por %p34, %p35
      %p37 = scmp.ne.s32.totalorder %s26, %s29
      %p38 = scmp.eq.s32.totalorder %s21, 1
      %p39 = por %p37, %p38
      %p40 = scmp.ne.s32.totalorder %s29, %s30
      %p41 = scmp.eq.s32.totalorder %s21, 0
      %p42 = por %p40, %p41
      %p43 = scmp.ne.s32.totalorder %s29, %s30
      %p44 = scmp.eq.s32.totalorder %s22, 1
      %p45 = por %p43, %p44
      %p47 = scmp.ne.s32.totalorder %s30, %s46
      %p48 = scmp.eq.s32.totalorder %s22, 0
      %p49 = por %p47, %p48
      %s51 = sadd.s32 %s50, 1
      %p54 = scmp.eq.s32.totalorder %s16, 1
      %p55 = scmp.ne.s32.totalorder %s50, %s52
      %p56 = scmp.eq.s32.totalorder %s16, 0
      %p57 = por %p55, %p56
      %p58 = scmp.ne.s32.totalorder %s50, %s52
      %p59 = scmp.eq.s32.totalorder %s21, 1
      %p60 = por %p58, %p59
      %p61 = scmp.ne.s32.totalorder %s52, %s53
      %p62 = scmp.eq.s32.totalorder %s21, 0
      %p63 = por %p61, %p62
      %p64 = scmp.ne.s32.totalorder %s52, %s53
      %p65 = scmp.eq.s32.totalorder %s22, 1
      %p66 = por %p64, %p65
      %p68 = scmp.ne.s32.totalorder %s53, %s67
      %p69 = scmp.eq.s32.totalorder %s22, 0
      %p70 = por %p68, %p69
      %s72 = sadd.s32 %s71, 1
      %p75 = scmp.eq.s32.totalorder %s16, 1
      %p76 = scmp.ne.s32.totalorder %s71, %s73
      %p77 = scmp.eq.s32.totalorder %s16, 0
      %p78 = por %p76, %p77
      %p79 = scmp.ne.s32.totalorder %s71, %s73
      %p80 = scmp.eq.s32.totalorder %s21, 1
      %p81 = por %p79, %p80
      %p82 = scmp.ne.s32.totalorder %s73, %s74
      %p83 = scmp.eq.s32.totalorder %s21, 0
      %p84 = por %p82, %p83
      %p85 = scmp.ne.s32.totalorder %s73, %s74
      %p86 = scmp.eq.s32.totalorder %s22, 1
      %p87 = por %p85, %p86
      %p89 = scmp.ne.s32.totalorder %s74, %s88
      %p90 = scmp.eq.s32.totalorder %s22, 0
      %p91 = por %p89, %p90
      %s93 = sadd.s32 %s92, 1
      %p96 = scmp.eq.s32.totalorder %s16, 1
      %p97 = scmp.ne.s32.totalorder %s92, %s94
      %p98 = scmp.eq.s32.totalorder %s16, 0
      %p99 = por %p97, %p98
      %p100 = scmp.ne.s32.totalorder %s92, %s94
      %p101 = scmp.eq.s32.totalorder %s21, 1
      %p102 = por %p100, %p101
      %p103 = scmp.ne.s32.totalorder %s94, %s95
      %p104 = scmp.eq.s32.totalorder %s21, 0
      %p105 = por %p103, %p104
      %p106 = scmp.ne.s32.totalorder %s94, %s95
      %p107 = scmp.eq.s32.totalorder %s22, 1
      %p108 = por %p106, %p107
      %p110 = scmp.ne.s32.totalorder %s95, %s109
      %p111 = scmp.eq.s32.totalorder %s22, 0
      %p112 = por %p110, %p111
      %s114 = sadd.s32 %s113, 1
      %p117 = scmp.eq.s32.totalorder %s16, 1
      %p118 = scmp.ne.s32.totalorder %s113, %s115
      %p119 = scmp.eq.s32.totalorder %s16, 0
      %p120 = por %p118, %p119
      %p121 = scmp.ne.s32.totalorder %s113, %s115
      %p122 = scmp.eq.s32.totalorder %s21, 1
      %p123 = por %p121, %p122
      %p124 = scmp.ne.s32.totalorder %s115, %s116
      %p125 = scmp.eq.s32.totalorder %s21, 0
      %p126 = por %p124, %p125
      %p127 = scmp.ne.s32.totalorder %s115, %s116
      %p128 = scmp.eq.s32.totalorder %s22, 1
      %p129 = por %p127, %p128
      %p131 = scmp.ne.s32.totalorder %s116, %s130
      %p132 = scmp.eq.s32.totalorder %s22, 0
      %p133 = por %p131, %p132
      %s135 = sadd.s32 %s134, 1
      %p138 = scmp.eq.s32.totalorder %s16, 1
      %p139 = scmp.ne.s32.totalorder %s134, %s136
      %p140 = scmp.eq.s32.totalorder %s16, 0
      %p141 = por %p139, %p140
      %p142 = scmp.ne.s32.totalorder %s134, %s136
      %p143 = scmp.eq.s32.totalorder %s21, 1
      %p144 = por %p142, %p143
      %p145 = scmp.ne.s32.totalorder %s136, %s137
      %p146 = scmp.eq.s32.totalorder %s21, 0
      %p147 = por %p145, %p146
      %p148 = scmp.ne.s32.totalorder %s136, %s137
      %p149 = scmp.eq.s32.totalorder %s22, 1
      %p150 = por %p148, %p149
      %p152 = scmp.ne.s32.totalorder %s137, %s151
      %p153 = scmp.eq.s32.totalorder %s22, 0
      %p154 = por %p152, %p153
      %s156 = sadd.s32 %s155, 1
      %p159 = scmp.eq.s32.totalorder %s16, 1
      %p160 = scmp.ne.s32.totalorder %s155, %s157
      %p161 = scmp.eq.s32.totalorder %s16, 0
      %p162 = por %p160, %p161
      %p163 = scmp.ne.s32.totalorder %s155, %s157
      %p164 = scmp.eq.s32.totalorder %s21, 1
      %p165 = por %p163, %p164
      %p166 = scmp.ne.s32.totalorder %s157, %s158
      %p167 = scmp.eq.s32.totalorder %s21, 0
      %p168 = por %p166, %p167
      %p169 = scmp.ne.s32.totalorder %s157, %s158
      %p170 = scmp.eq.s32.totalorder %s22, 1
      %p171 = por %p169, %p170
      %p173 = scmp.ne.s32.totalorder %s158, %s172
      %p174 = scmp.eq.s32.totalorder %s22, 0
      %p175 = por %p173, %p174
      %s176 = ssub.s32 %s16, %s23
      %p177 = scmp.eq.s32.totalorder %s176, 0
      %s179 = sadd.s32 %s178, 1
      %s180 = scalar_select %p177, %s178, %s179
      %p183 = pneg %p177
      %p184 = scmp.eq.s32.totalorder %s16, 1
      %p185 = por %p183, %p184
      %p186 = scmp.ne.s32.totalorder %s178, %s181
      %p187 = scmp.eq.s32.totalorder %s16, 0
      %p188 = por %p186, %p187
      %p189 = scmp.ne.s32.totalorder %s178, %s181
      %p190 = scmp.eq.s32.totalorder %s21, 1
      %p191 = por %p189, %p190
      %p192 = scmp.ne.s32.totalorder %s181, %s182
      %p193 = scmp.eq.s32.totalorder %s21, 0
      %p194 = por %p192, %p193
      %p195 = scmp.ne.s32.totalorder %s181, %s182
      %p196 = scmp.eq.s32.totalorder %s22, 1
      %p197 = por %p195, %p196
      %p199 = scmp.ne.s32.totalorder %s182, %s198
      %p200 = scmp.eq.s32.totalorder %s22, 0
      %p201 = por %p199, %p200
      %p202 = scmp.le.s32.totalorder 1, %s16
      %p203 = scmp.lt.s32.totalorder %s16, 3
      %p204 = pnand %p202, %p203
      %p205 = pneg %p204
      // Predicated region
      $region9: #{bottleneck_forward.1} parent=5 // pred_check
        _
      $region10: #{bottleneck_forward.1} parent=5 // pred_check_branch
        %207 = sbr.rel (%p204) target = $region12
      $region11: #{bottleneck_forward.1} parent=5 // pred_region
        %s208 = ssub.s32 %s16, 1
        // Predicated region
        $region13: #{bottleneck_forward.1} parent=11 // pred_check
          %p209 = pneg %p63
        $region14: #{bottleneck_forward.1} parent=11 // pred_check_branch
          %211 = sbr.rel (%p209) target = $region16
        $region15: #{bottleneck_forward.1} parent=11 // pred_region
          _
        $region16: #{bottleneck_forward.1} parent=11 // pred_fallthru
          _
        // Predicated region
        $region17: #{bottleneck_forward.1} parent=11 // pred_check
          %p212 = pneg %p84
        $region18: #{bottleneck_forward.1} parent=11 // pred_check_branch
          %214 = sbr.rel (%p212) target = $region20
        $region19: #{bottleneck_forward.1} parent=11 // pred_region
          _
        $region20: #{bottleneck_forward.1} parent=11 // pred_fallthru
          _
        // Predicated region
        $region21: #{bottleneck_forward.1} parent=11 // pred_check
          %p215 = pneg %p105
        $region22: #{bottleneck_forward.1} parent=11 // pred_check_branch
          %217 = sbr.rel (%p215) target = $region24
        $region23: #{bottleneck_forward.1} parent=11 // pred_region
          _
        $region24: #{bottleneck_forward.1} parent=11 // pred_fallthru
          _
        // Predicated region
        $region25: #{bottleneck_forward.1} parent=11 // pred_check
          %p218 = pneg %p126
        $region26: #{bottleneck_forward.1} parent=11 // pred_check_branch
          %220 = sbr.rel (%p218) target = $region28
        $region27: #{bottleneck_forward.1} parent=11 // pred_region
          _
        $region28: #{bottleneck_forward.1} parent=11 // pred_fallthru
          _
        // Predicated region
        $region29: #{bottleneck_forward.1} parent=11 // pred_check
          %p221 = pneg %p147
        $region30: #{bottleneck_forward.1} parent=11 // pred_check_branch
          %223 = sbr.rel (%p221) target = $region32
        $region31: #{bottleneck_forward.1} parent=11 // pred_region
          _
        $region32: #{bottleneck_forward.1} parent=11 // pred_fallthru
          _
        // Predicated region
        $region33: #{bottleneck_forward.1} parent=11 // pred_check
          %p224 = pneg %p168
        $region34: #{bottleneck_forward.1} parent=11 // pred_check_branch
          %226 = sbr.rel (%p224) target = $region36
        $region35: #{bottleneck_forward.1} parent=11 // pred_region
          _
        $region36: #{bottleneck_forward.1} parent=11 // pred_fallthru
          _
      $region12: #{bottleneck_forward.1} parent=5 // pred_fallthru
        _
      %p227 = scmp.lt.s32.totalorder %s16, 2
      // Predicated region
      $region37: #{bottleneck_forward.1} parent=5 // pred_check
        %p228 = pneg %p227
      $region38: #{bottleneck_forward.1} parent=5 // pred_check_branch
        %230 = sbr.rel (%p228) target = $region40
      $region39: #{bottleneck_forward.1} parent=5 // pred_region
        // Predicated region
        $region41: #{bottleneck_forward.1} parent=39 // pred_check
          %p231 = pneg %p36
        $region42: #{bottleneck_forward.1} parent=39 // pred_check_branch
          %233 = sbr.rel (%p231) target = $region44
        $region43: #{bottleneck_forward.1} parent=39 // pred_region
          %p234 = scmp.lt.s32.totalorder %s16, 1
          %s235 = scalar_select %p234, %s16, 1
          %s236 = smul.addr %s235, 8
          %s237 = smul.addr %s236, 4
          %s238 = scalar_lea.vmem %s0, %s237
        $region44: #{bottleneck_forward.1} parent=39 // pred_fallthru
          _
      $region40: #{bottleneck_forward.1} parent=5 // pred_fallthru
        _
      %p239 = scmp.le.s32.totalorder 1, %s16
      %p240 = scmp.lt.s32.totalorder %s16, 3
      %p241 = pnand %p239, %p240
      %p242 = pneg %p241
      // Predicated region
      $region45: #{bottleneck_forward.1} parent=5 // pred_check
        _
      $region46: #{bottleneck_forward.1} parent=5 // pred_check_branch
        %244 = sbr.rel (%p241) target = $region48
      $region47: #{bottleneck_forward.1} parent=5 // pred_region
        %s245 = ssub.s32 %s16, 1
        %p246 = scmp.lt.s32.totalorder %s21, 1
        %s247 = scalar_select %p246, %s21, 1
        %s248 = smul.addr %s247, 8
        %s249 = smul.addr %s248, 4
        %s250 = scalar_lea.vmem %s0, %s249
        %p251 = pneg %p42
        %p252 = pneg %p39
        %p253 = pneg %p63
        %p254 = pneg %p60
        %p255 = pneg %p84
        %p256 = pneg %p81
        %p257 = pneg %p105
        %p258 = pneg %p102
        %p259 = pneg %p126
        %p260 = pneg %p123
        %p261 = pneg %p147
        %p262 = pneg %p144
        %p263 = pneg %p168
        %p264 = pneg %p165
        %p265 = pneg %p194
        %p266 = pneg %p191
        %s267 = sand.u32 %s181, 1
        %s268 = scalar_lea.sflag [#allocation4], %s267
        %s269 = sand.u32 %s181, 1
        %s270 = smul.addr %s269, 32
        %s271 = scalar_lea.vmem [#allocation3], %s270
        %p272 = scmp.lt.s32.totalorder %s21, 1
        %s273 = scalar_select %p272, %s21, 1
        %s274 = smul.addr %s273, 8
        %s275 = smul.addr %s274, 4
        %s276 = scalar_lea.vmem %s0, %s275
        %v278 = vld [vmem:[%s276] sm:$0xf]
        %v279 = vld [vmem:[%s276 + $0x4] sm:$0xf]
        %v280 = vld [vmem:[%s276 + $0x8] sm:$0xf]
        %v281 = vld [vmem:[%s276 + $0xc] sm:$0xf]
        %v282 = vld [vmem:[%s276 + $0x10] sm:$0xf]
        %v283 = vld [vmem:[%s276 + $0x14] sm:$0xf]
        %v284 = vld [vmem:[%s276 + $0x18] sm:$0xf]
        %v285 = vld [vmem:[%s276 + $0x1c] sm:$0xf]
        %v286 = vld [vmem:[%s1] sm:$0xf]
        %v287 = vld [vmem:[%s1 + $0x4] sm:$0xf]
        %v288 = vld [vmem:[%s1 + $0x8] sm:$0xf]
        %v289 = vld [vmem:[%s1 + $0xc] sm:$0xf]
        %v290 = vld [vmem:[%s1 + $0x10] sm:$0xf]
        %v291 = vld [vmem:[%s1 + $0x14] sm:$0xf]
        %v292 = vld [vmem:[%s1 + $0x18] sm:$0xf]
        %v293 = vld [vmem:[%s1 + $0x1c] sm:$0xf]
        %v294 = vld [vmem:[%s2] sm:$0x1]
        %v296 = vlaneseq
        %v297 = vshrl.u32 %v296, 7
        %v298 = vsub.s32 0, %v297
        %v299 = vrot.slane %v294, %v298
        %v309 = vunpack.c.l.b16 %v278
        %v310 = vunpack.c.l.b16 %v279
        %v311 = vunpack.c.l.b16 %v280
        %v312 = vunpack.c.l.b16 %v281
        %v313 = vunpack.c.l.b16 %v282
        %v314 = vunpack.c.l.b16 %v283
        %v315 = vunpack.c.l.b16 %v284
        %v316 = vunpack.c.l.b16 %v285
        %v317 = vpack.c.b16 %v310, %v309
        %v318 = vpack.c.b16 %v312, %v311
        %v319 = vpack.c.b16 %v314, %v313
        %v320 = vpack.c.b16 %v316, %v315
        %v329 = vunpack.c.l.b16 %v286
        %v330 = vunpack.c.l.b16 %v287
        %v331 = vunpack.c.l.b16 %v288
        %v332 = vunpack.c.l.b16 %v289
        %v333 = vunpack.c.l.b16 %v290
        %v334 = vunpack.c.l.b16 %v291
        %v335 = vunpack.c.l.b16 %v292
        %v336 = vunpack.c.l.b16 %v293
        %v337 = vpack.c.b16 %v330, %v329
        %v338 = vpack.c.b16 %v332, %v331
        %v339 = vpack.c.b16 %v334, %v333
        %v340 = vpack.c.b16 %v336, %v335
        %vm345 = vcmask 523264
        %v347 = vsel %vm345, %v317, 0
        %v350 = vsel %vm345, %v318, 0
        %v353 = vsel %vm345, %v319, 0
        %v356 = vsel %vm345, %v320, 0
        %358 = vmatprep.subr.bf16.mxu0 0
        %359 = vmatpush1.bf16.msra.mxu0 %v337
        %360 = vmatprep.subr.bf16.mxu0 0
        %361 = vmatpush1.bf16.msra.mxu0 %v338
        %362 = vmatprep.subr.bf16.mxu0 0
        %363 = vmatpush1.bf16.msra.mxu0 %v339
        %364 = vmatprep.subr.bf16.mxu0 0
        %365 = vmatpush1.bf16.msra.mxu0 %v340
        %366 = vmatprep.subr.bf16.mxu0 0
        %367 = vmatpush1.bf16.msra.mxu0 0
        %368 = vmatprep.subr.bf16.mxu0 0
        %369 = vmatpush1.bf16.msra.mxu0 0
        %370 = vmatprep.subr.bf16.mxu0 0
        %371 = vmatpush1.bf16.msra.mxu0 0
        %372 = vmatprep.subr.bf16.mxu0 0
        %373 = vmatpush1.bf16.msra.mxu0 0
        %374 = vmatprep.subr.bf16.mxu0 0
        %375 = vmatpush1.bf16.msra.mxu0 0
        %376 = vmatprep.subr.bf16.mxu0 0
        %377 = vmatpush1.bf16.msra.mxu0 0
        %378 = vmatprep.subr.bf16.mxu0 0
        %379 = vmatpush1.bf16.msra.mxu0 0
        %380 = vmatprep.subr.bf16.mxu0 0
        %381 = vmatpush1.bf16.msra.mxu0 0
        %382 = vmatprep.subr.bf16.mxu0 0
        %383 = vmatpush1.bf16.msra.mxu0 0
        %384 = vmatprep.subr.bf16.mxu0 0
        %385 = vmatpush1.bf16.msra.mxu0 0
        %386 = vmatprep.subr.bf16.mxu0 0
        %387 = vmatpush1.bf16.msra.mxu0 0
        %388 = vmatprep.subr.bf16.mxu0 0
        %389 = vmatpush1.bf16.msra.mxu0 0
        %390 = vmatprep.mubr.bf16.mxu0 0
        %391 = vmatmul.mubr.bf16.gmra.mrb[0].mxu0 %v347
        %v392 = vpop.f32.mrb[0].mxu0
        %v393 = vadd.f32 %v299, %v392
        %v394 = vpop.f32.mrb[0].mxu0
        %v395 = vpop.f32.mrb[0].mxu0
        %v396 = vadd.f32 %v299, %v395
        %v397 = vpop.f32.mrb[0].mxu0
        %398 = vmatprep.mubr.bf16.mxu0 0
        %399 = vmatmul.mubr.bf16.gmra.mrb[0].mxu0 %v350
        %v400 = vpop.f32.mrb[0].mxu0
        %v401 = vadd.f32 %v299, %v400
        %v402 = vpop.f32.mrb[0].mxu0
        %v403 = vpop.f32.mrb[0].mxu0
        %v404 = vadd.f32 %v299, %v403
        %v405 = vpop.f32.mrb[0].mxu0
        %406 = vmatprep.mubr.bf16.mxu0 0
        %407 = vmatmul.mubr.bf16.gmra.mrb[0].mxu0 %v353
        %v408 = vpop.f32.mrb[0].mxu0
        %v409 = vadd.f32 %v299, %v408
        %v410 = vpop.f32.mrb[0].mxu0
        %v411 = vpop.f32.mrb[0].mxu0
        %v412 = vadd.f32 %v299, %v411
        %v413 = vpop.f32.mrb[0].mxu0
        %414 = vmatprep.mubr.bf16.mxu0 0
        %415 = vmatmul.mubr.bf16.gmra.mrb[0].mxu0 %v356
        %v416 = vpop.f32.mrb[0].mxu0
        %v417 = vadd.f32 %v299, %v416
        %v418 = vpop.f32.mrb[0].mxu0
        %v419 = vpop.f32.mrb[0].mxu0
        %v420 = vadd.f32 %v299, %v419
        %v421 = vpop.f32.mrb[0].mxu0
        %422 = vdwg.mxu0
        %v423 = vmax.f32 %v393, 0.0
        %v424 = vmax.f32 %v396, 0.0
        %v425 = vmax.f32 %v401, 0.0
        %v426 = vmax.f32 %v404, 0.0
        %v427 = vmax.f32 %v409, 0.0
        %v428 = vmax.f32 %v412, 0.0
        %v429 = vmax.f32 %v417, 0.0
        %v430 = vmax.f32 %v420, 0.0
        %vm431 = vcmask 125952
        %432 = vst.msk [vmem:[#allocation2] sm:$0xf] %vm431, 0
        %433 = vst.msk [vmem:[#allocation2 + $0x4] sm:$0xf] %vm431, 0
        %434 = vst.msk [vmem:[#allocation2 + $0x8] sm:$0xf] %vm431, 0
        %s435 = scalar_lea.vmem [#allocation2], 108
        %436 = vst.msk [vmem:[%s435] sm:$0xf] %vm431, 0
        %437 = vst.msk [vmem:[%s435 + $0x4] sm:$0xf] %vm431, 0
        %438 = vst.msk [vmem:[%s435 + $0x8] sm:$0xf] %vm431, 0
        %s439 = scalar_lea.vmem [#allocation2], 12
        %vm440 = vcmask 125955
        %vm441 = vsmask.f32 7950
        %vm442 = vmand %vm440, %vm441
        %v443 = vld [vmem:[%s439] sm:$0x8]
        %v444 = vsel %vm442, 0, %v443
        %445 = vst [vmem:[%s439] sm:$0x8] %v444
        %v446 = vld [vmem:[%s439 + $0xc] sm:$0x8]
        %v447 = vsel %vm442, 0, %v446
        %448 = vst [vmem:[%s439 + $0xc] sm:$0x8] %v447
        %v449 = vld [vmem:[%s439 + $0x18] sm:$0x8]
        %v450 = vsel %vm442, 0, %v449
        %451 = vst [vmem:[%s439 + $0x18] sm:$0x8] %v450
        %v452 = vld [vmem:[%s439 + $0x24] sm:$0x8]
        %v453 = vsel %vm442, 0, %v452
        %454 = vst [vmem:[%s439 + $0x24] sm:$0x8] %v453
        %v455 = vld [vmem:[%s439 + $0x30] sm:$0x8]
        %v456 = vsel %vm442, 0, %v455
        %457 = vst [vmem:[%s439 + $0x30] sm:$0x8] %v456
        %v458 = vld [vmem:[%s439 + $0x3c] sm:$0x8]
        %v459 = vsel %vm442, 0, %v458
        %460 = vst [vmem:[%s439 + $0x3c] sm:$0x8] %v459
        %v461 = vld [vmem:[%s439 + $0x48] sm:$0x8]
        %v462 = vsel %vm442, 0, %v461
        %463 = vst [vmem:[%s439 + $0x48] sm:$0x8] %v462
        %v464 = vld [vmem:[%s439 + $0x54] sm:$0x8]
        %v465 = vsel %vm442, 0, %v464
        %466 = vst [vmem:[%s439 + $0x54] sm:$0x8] %v465
        %vm467 = vcmask 122880
        %vm468 = vsmask.f32 256
        %vm469 = vmand %vm467, %vm468
        %v470 = vld [vmem:[%s439 + $0x8] sm:$0x1]
        %v471 = vsel %vm469, 0, %v470
        %472 = vst [vmem:[%s439 + $0x8] sm:$0x1] %v471
        %v473 = vld [vmem:[%s439 + $0x14] sm:$0x1]
        %v474 = vsel %vm469, 0, %v473
        %475 = vst [vmem:[%s439 + $0x14] sm:$0x1] %v474
        %v476 = vld [vmem:[%s439 + $0x20] sm:$0x1]
        %v477 = vsel %vm469, 0, %v476
        %478 = vst [vmem:[%s439 + $0x20] sm:$0x1] %v477
        %v479 = vld [vmem:[%s439 + $0x2c] sm:$0x1]
        %v480 = vsel %vm469, 0, %v479
        %481 = vst [vmem:[%s439 + $0x2c] sm:$0x1] %v480
        %v482 = vld [vmem:[%s439 + $0x38] sm:$0x1]
        %v483 = vsel %vm469, 0, %v482
        %484 = vst [vmem:[%s439 + $0x38] sm:$0x1] %v483
        %v485 = vld [vmem:[%s439 + $0x44] sm:$0x1]
        %v486 = vsel %vm469, 0, %v485
        %487 = vst [vmem:[%s439 + $0x44] sm:$0x1] %v486
        %v488 = vld [vmem:[%s439 + $0x50] sm:$0x1]
        %v489 = vsel %vm469, 0, %v488
        %490 = vst [vmem:[%s439 + $0x50] sm:$0x1] %v489
        %v491 = vld [vmem:[%s439 + $0x5c] sm:$0x1]
        %v492 = vsel %vm469, 0, %v491
        %493 = vst [vmem:[%s439 + $0x5c] sm:$0x1] %v492
        %v494 = vpack.c.bf16 %v424, %v423
        %v495 = vpack.c.bf16 %v426, %v425
        %v496 = vpack.c.bf16 %v428, %v427
        %v497 = vpack.c.bf16 %v430, %v429
        %v502 = vunpack.c.l.b16 %v494
        %v503 = vunpack.c.h.b16 %v494
        %v504 = vunpack.c.l.b16 %v495
        %v505 = vunpack.c.h.b16 %v495
        %v506 = vunpack.c.l.b16 %v496
        %v507 = vunpack.c.h.b16 %v496
        %v508 = vunpack.c.l.b16 %v497
        %v509 = vunpack.c.h.b16 %v497
        %v510 = vpack.c.b16 %v502, %v502
        %v511 = vpack.c.b16 %v503, %v503
        %v512 = vpack.c.b16 %v504, %v504
        %v513 = vpack.c.b16 %v505, %v505
        %v514 = vpack.c.b16 %v506, %v506
        %v515 = vpack.c.b16 %v507, %v507
        %v516 = vpack.c.b16 %v508, %v508
        %v517 = vpack.c.b16 %v509, %v509
        %526 = vst.msk [vmem:[%s439 + $0x4] sm:$0xf] %vm431, %v510
        %527 = vst.msk [vmem:[%s439 + $0x10] sm:$0xf] %vm431, %v511
        %528 = vst.msk [vmem:[%s439 + $0x1c] sm:$0xf] %vm431, %v512
        %529 = vst.msk [vmem:[%s439 + $0x28] sm:$0xf] %vm431, %v513
        %530 = vst.msk [vmem:[%s439 + $0x34] sm:$0xf] %vm431, %v514
        %531 = vst.msk [vmem:[%s439 + $0x40] sm:$0xf] %vm431, %v515
        %532 = vst.msk [vmem:[%s439 + $0x4c] sm:$0xf] %vm431, %v516
        %533 = vst.msk [vmem:[%s439 + $0x58] sm:$0xf] %vm431, %v517
        %v534 = vld [vmem:[#allocation2] sm:$0x8]
        %v535 = vld [vmem:[#allocation2 + $0x4] sm:$0xf]
        %v536 = vld [vmem:[#allocation2 + $0xc] sm:$0x8]
        %v537 = vld [vmem:[#allocation2 + $0x10] sm:$0xf]
        %v538 = vld [vmem:[#allocation2 + $0x18] sm:$0x8]
        %v539 = vld [vmem:[#allocation2 + $0x1c] sm:$0xf]
        %v540 = vld [vmem:[#allocation2 + $0x24] sm:$0x8]
        %v541 = vld [vmem:[#allocation2 + $0x28] sm:$0xf]
        %v542 = vld [vmem:[#allocation2 + $0x30] sm:$0x8]
        %v543 = vld [vmem:[#allocation2 + $0x34] sm:$0xf]
        %v544 = vld [vmem:[#allocation2 + $0x3c] sm:$0x8]
        %v545 = vld [vmem:[#allocation2 + $0x40] sm:$0xf]
        %v546 = vld [vmem:[#allocation2 + $0x48] sm:$0x8]
        %v547 = vld [vmem:[#allocation2 + $0x4c] sm:$0xf]
        %v548 = vld [vmem:[#allocation2 + $0x54] sm:$0x8]
        %v549 = vld [vmem:[#allocation2 + $0x58] sm:$0xf]
        %vm550 = vsmask.f32 4368
        %vm551 = vmor %vm468, %vm550
        %v553 = vshrl.u32 %v534, 16
        %v555 = vrot.slane %v553, 7
        %v556 = vrot.slane %v555, 4
        %v558 = vshrl.u32 %v535, 16
        %v560 = vrot.slane %v558, 7
        %v561 = vshll.u32 %v535, 16
        %v563 = vor.u32 %v560, %v561
        %v564 = vsel %vm551, %v556, %v563
        %v566 = vshrl.u32 %v536, 16
        %v568 = vrot.slane %v566, 7
        %v569 = vrot.slane %v568, 4
        %v571 = vshrl.u32 %v537, 16
        %v573 = vrot.slane %v571, 7
        %v574 = vshll.u32 %v537, 16
        %v576 = vor.u32 %v573, %v574
        %v577 = vsel %vm551, %v569, %v576
        %v579 = vshrl.u32 %v538, 16
        %v581 = vrot.slane %v579, 7
        %v582 = vrot.slane %v581, 4
        %v584 = vshrl.u32 %v539, 16
        %v586 = vrot.slane %v584, 7
        %v587 = vshll.u32 %v539, 16
        %v589 = vor.u32 %v586, %v587
        %v590 = vsel %vm551, %v582, %v589
        %v592 = vshrl.u32 %v540, 16
        %v594 = vrot.slane %v592, 7
        %v595 = vrot.slane %v594, 4
        %v597 = vshrl.u32 %v541, 16
        %v599 = vrot.slane %v597, 7
        %v600 = vshll.u32 %v541, 16
        %v602 = vor.u32 %v599, %v600
        %v603 = vsel %vm551, %v595, %v602
        %v605 = vshrl.u32 %v542, 16
        %v607 = vrot.slane %v605, 7
        %v608 = vrot.slane %v607, 4
        %v610 = vshrl.u32 %v543, 16
        %v612 = vrot.slane %v610, 7
        %v613 = vshll.u32 %v543, 16
        %v615 = vor.u32 %v612, %v613
        %v616 = vsel %vm551, %v608, %v615
        %v618 = vshrl.u32 %v544, 16
        %v620 = vrot.slane %v618, 7
        %v621 = vrot.slane %v620, 4
        %v623 = vshrl.u32 %v545, 16
        %v625 = vrot.slane %v623, 7
        %v626 = vshll.u32 %v545, 16
        %v628 = vor.u32 %v625, %v626
        %v629 = vsel %vm551, %v621, %v628
        %v631 = vshrl.u32 %v546, 16
        %v633 = vrot.slane %v631, 7
        %v634 = vrot.slane %v633, 4
        %v636 = vshrl.u32 %v547, 16
        %v638 = vrot.slane %v636, 7
        %v639 = vshll.u32 %v547, 16
        %v641 = vor.u32 %v638, %v639
        %v642 = vsel %vm551, %v634, %v641
        %v644 = vshrl.u32 %v548, 16
        %v646 = vrot.slane %v644, 7
        %v647 = vrot.slane %v646, 4
        %v649 = vshrl.u32 %v549, 16
        %v651 = vrot.slane %v649, 7
        %v652 = vshll.u32 %v549, 16
        %v654 = vor.u32 %v651, %v652
        %v655 = vsel %vm551, %v647, %v654
        %v656 = vld [vmem:[%s3] sm:$0xf]
        %v657 = vld [vmem:[%s3 + $0x4] sm:$0xf]
        %s658 = scalar_lea.vmem %s3, 8
        %v659 = vld [vmem:[%s658] sm:$0xf]
        %v660 = vld [vmem:[%s658 + $0x4] sm:$0xf]
        %v669 = vunpack.c.l.b16 %v535
        %v670 = vunpack.c.l.b16 %v537
        %v671 = vunpack.c.l.b16 %v539
        %v672 = vunpack.c.l.b16 %v541
        %v673 = vunpack.c.l.b16 %v543
        %v674 = vunpack.c.l.b16 %v545
        %v675 = vunpack.c.l.b16 %v547
        %v676 = vunpack.c.l.b16 %v549
        %v677 = vpack.c.b16 %v670, %v669
        %v678 = vpack.c.b16 %v672, %v671
        %v679 = vpack.c.b16 %v674, %v673
        %v680 = vpack.c.b16 %v676, %v675
        %v683 = vunpack.c.l.b16 %v659
        %v684 = vunpack.c.l.b16 %v660
        %v685 = vpack.c.b16 %v684, %v683
        %vm687 = vcmask 130048
        %v689 = vsel %vm687, %v677, 0
        %v692 = vsel %vm687, %v678, 0
        %v695 = vsel %vm687, %v679, 0
        %v698 = vsel %vm687, %v680, 0
        %700 = vmatprep.subr.bf16.mxu0 0
        %701 = vmatpush1.bf16.msra.mxu0 %v685
        %702 = vmatprep.subr.bf16.mxu0 0
        %703 = vmatpush1.bf16.msra.mxu0 0
        %704 = vmatprep.subr.bf16.mxu0 0
        %705 = vmatpush1.bf16.msra.mxu0 0
        %706 = vmatprep.subr.bf16.mxu0 0
        %707 = vmatpush1.bf16.msra.mxu0 0
        %708 = vmatprep.subr.bf16.mxu0 0
        %709 = vmatpush1.bf16.msra.mxu0 0
        %710 = vmatprep.subr.bf16.mxu0 0
        %711 = vmatpush1.bf16.msra.mxu0 0
        %712 = vmatprep.subr.bf16.mxu0 0
        %713 = vmatpush1.bf16.msra.mxu0 0
        %714 = vmatprep.subr.bf16.mxu0 0
        %715 = vmatpush1.bf16.msra.mxu0 0
        %716 = vmatprep.subr.bf16.mxu0 0
        %717 = vmatpush1.bf16.msra.mxu0 0
        %718 = vmatprep.subr.bf16.mxu0 0
        %719 = vmatpush1.bf16.msra.mxu0 0
        %720 = vmatprep.subr.bf16.mxu0 0
        %721 = vmatpush1.bf16.msra.mxu0 0
        %722 = vmatprep.subr.bf16.mxu0 0
        %723 = vmatpush1.bf16.msra.mxu0 0
        %724 = vmatprep.subr.bf16.mxu0 0
        %725 = vmatpush1.bf16.msra.mxu0 0
        %726 = vmatprep.subr.bf16.mxu0 0
        %727 = vmatpush1.bf16.msra.mxu0 0
        %728 = vmatprep.subr.bf16.mxu0 0
        %729 = vmatpush1.bf16.msra.mxu0 0
        %730 = vmatprep.subr.bf16.mxu0 0
        %731 = vmatpush1.bf16.msra.mxu0 0
        %732 = vmatprep.mubr.bf16.mxu0 0
        %733 = vmatmul.mubr.bf16.gmra.mrb[0].mxu0 %v689
        %v734 = vpop.f32.mrb[0].mxu0
        %v735 = vadd.f32 0.0, %v734
        %v736 = vpop.f32.mrb[0].mxu0
        %v737 = vpop.f32.mrb[0].mxu0
        %v738 = vadd.f32 0.0, %v737
        %v739 = vpop.f32.mrb[0].mxu0
        %740 = vmatprep.mubr.bf16.mxu0 0
        %741 = vmatmul.mubr.bf16.gmra.mrb[0].mxu0 %v692
        %v742 = vpop.f32.mrb[0].mxu0
        %v743 = vadd.f32 0.0, %v742
        %v744 = vpop.f32.mrb[0].mxu0
        %v745 = vpop.f32.mrb[0].mxu0
        %v746 = vadd.f32 0.0, %v745
        %v747 = vpop.f32.mrb[0].mxu0
        %748 = vmatprep.mubr.bf16.mxu0 0
        %749 = vmatmul.mubr.bf16.gmra.mrb[0].mxu0 %v695
        %v750 = vpop.f32.mrb[0].mxu0
        %v751 = vadd.f32 0.0, %v750
        %v752 = vpop.f32.mrb[0].mxu0
        %v753 = vpop.f32.mrb[0].mxu0
        %v754 = vadd.f32 0.0, %v753
        %v755 = vpop.f32.mrb[0].mxu0
        %756 = vmatprep.mubr.bf16.mxu0 0
        %757 = vmatmul.mubr.bf16.gmra.mrb[0].mxu0 %v698
        %v758 = vpop.f32.mrb[0].mxu0
        %v759 = vadd.f32 0.0, %v758
        %v760 = vpop.f32.mrb[0].mxu0
        %v761 = vpop.f32.mrb[0].mxu0
        %v762 = vadd.f32 0.0, %v761
        %v763 = vpop.f32.mrb[0].mxu0
        %764 = vdwg.mxu0
        %v765 = vunpack.c.l.b16 %v564
        %v766 = vunpack.c.l.b16 %v577
        %v767 = vunpack.c.l.b16 %v590
        %v768 = vunpack.c.l.b16 %v603
        %v769 = vunpack.c.l.b16 %v616
        %v770 = vunpack.c.l.b16 %v629
        %v771 = vunpack.c.l.b16 %v642
        %v772 = vunpack.c.l.b16 %v655
        %v773 = vpack.c.b16 %v766, %v765
        %v774 = vpack.c.b16 %v768, %v767
        %v775 = vpack.c.b16 %v770, %v769
        %v776 = vpack.c.b16 %v772, %v771
        %v779 = vunpack.c.l.b16 %v656
        %v780 = vunpack.c.l.b16 %v657
        %v781 = vpack.c.b16 %v780, %v779
        %v784 = vsel %vm687, %v773, 0
        %v787 = vsel %vm687, %v774, 0
        %v790 = vsel %vm687, %v775, 0
        %v793 = vsel %vm687, %v776, 0
        %795 = vmatprep.subr.bf16.mxu0 0
        %796 = vmatpush1.bf16.msra.mxu0 %v781
        %797 = vmatprep.subr.bf16.mxu0 0
        %798 = vmatpush1.bf16.msra.mxu0 0
        %799 = vmatprep.subr.bf16.mxu0 0
        %800 = vmatpush1.bf16.msra.mxu0 0
        %801 = vmatprep.subr.bf16.mxu0 0
        %802 = vmatpush1.bf16.msra.mxu0 0
        %803 = vmatprep.subr.bf16.mxu0 0
        %804 = vmatpush1.bf16.msra.mxu0 0
        %805 = vmatprep.subr.bf16.mxu0 0
        %806 = vmatpush1.bf16.msra.mxu0 0
        %807 = vmatprep.subr.bf16.mxu0 0
        %808 = vmatpush1.bf16.msra.mxu0 0
        %809 = vmatprep.subr.bf16.mxu0 0
        %810 = vmatpush1.bf16.msra.mxu0 0
        %811 = vmatprep.subr.bf16.mxu0 0
        %812 = vmatpush1.bf16.msra.mxu0 0
        %813 = vmatprep.subr.bf16.mxu0 0
        %814 = vmatpush1.bf16.msra.mxu0 0
        %815 = vmatprep.subr.bf16.mxu0 0
        %816 = vmatpush1.bf16.msra.mxu0 0
        %817 = vmatprep.subr.bf16.mxu0 0
        %818 = vmatpush1.bf16.msra.mxu0 0
        %819 = vmatprep.subr.bf16.mxu0 0
        %820 = vmatpush1.bf16.msra.mxu0 0
        %821 = vmatprep.subr.bf16.mxu0 0
        %822 = vmatpush1.bf16.msra.mxu0 0
        %823 = vmatprep.subr.bf16.mxu0 0
        %824 = vmatpush1.bf16.msra.mxu0 0
        %825 = vmatprep.subr.bf16.mxu0 0
        %826 = vmatpush1.bf16.msra.mxu0 0
        %827 = vmatprep.mubr.bf16.mxu0 0
        %828 = vmatmul.mubr.bf16.gmra.mrb[0].mxu0 %v784
        %v829 = vpop.f32.mrb[0].mxu0
        %v830 = vadd.f32 %v735, %v829
        %v831 = vpop.f32.mrb[0].mxu0
        %v832 = vpop.f32.mrb[0].mxu0
        %v833 = vadd.f32 %v738, %v832
        %v834 = vpop.f32.mrb[0].mxu0
        %835 = vmatprep.mubr.bf16.mxu0 0
        %836 = vmatmul.mubr.bf16.gmra.mrb[0].mxu0 %v787
        %v837 = vpop.f32.mrb[0].mxu0
        %v838 = vadd.f32 %v743, %v837
        %v839 = vpop.f32.mrb[0].mxu0
        %v840 = vpop.f32.mrb[0].mxu0
        %v841 = vadd.f32 %v746, %v840
        %v842 = vpop.f32.mrb[0].mxu0
        %843 = vmatprep.mubr.bf16.mxu0 0
        %844 = vmatmul.mubr.bf16.gmra.mrb[0].mxu0 %v790
        %v845 = vpop.f32.mrb[0].mxu0
        %v846 = vadd.f32 %v751, %v845
        %v847 = vpop.f32.mrb[0].mxu0
        %v848 = vpop.f32.mrb[0].mxu0
        %v849 = vadd.f32 %v754, %v848
        %v850 = vpop.f32.mrb[0].mxu0
        %851 = vmatprep.mubr.bf16.mxu0 0
        %852 = vmatmul.mubr.bf16.gmra.mrb[0].mxu0 %v793
        %v853 = vpop.f32.mrb[0].mxu0
        %v854 = vadd.f32 %v759, %v853
        %v855 = vpop.f32.mrb[0].mxu0
        %v856 = vpop.f32.mrb[0].mxu0
        %v857 = vadd.f32 %v762, %v856
        %v858 = vpop.f32.mrb[0].mxu0
        %859 = vdwg.mxu0
        %v860 = vld [vmem:[#allocation2 + $0x4] sm:$0xf]
        %v861 = vld [vmem:[#allocation2 + $0x8] sm:$0x1]
        %v862 = vld [vmem:[#allocation2 + $0x10] sm:$0xf]
        %v863 = vld [vmem:[#allocation2 + $0x14] sm:$0x1]
        %v864 = vld [vmem:[#allocation2 + $0x1c] sm:$0xf]
        %v865 = vld [vmem:[#allocation2 + $0x20] sm:$0x1]
        %v866 = vld [vmem:[#allocation2 + $0x28] sm:$0xf]
        %v867 = vld [vmem:[#allocation2 + $0x2c] sm:$0x1]
        %v868 = vld [vmem:[#allocation2 + $0x34] sm:$0xf]
        %v869 = vld [vmem:[#allocation2 + $0x38] sm:$0x1]
        %v870 = vld [vmem:[#allocation2 + $0x40] sm:$0xf]
        %v871 = vld [vmem:[#allocation2 + $0x44] sm:$0x1]
        %v872 = vld [vmem:[#allocation2 + $0x4c] sm:$0xf]
        %v873 = vld [vmem:[#allocation2 + $0x50] sm:$0x1]
        %v874 = vld [vmem:[#allocation2 + $0x58] sm:$0xf]
        %v875 = vld [vmem:[#allocation2 + $0x5c] sm:$0x1]
        %vm876 = vsmask.f32 3328
        %vm877 = vsmask.f32 7440
        %vm878 = vmor %vm876, %vm877
        %v880 = vshrl.u32 %v860, 16
        %v882 = vrot.slane %v880, 4
        %v883 = vshll.u32 %v860, 16
        %v885 = vrot.slane %v883, 5
        %v886 = vor.u32 %v882, %v885
        %v887 = vrot.slane %v886, 4
        %v889 = vshll.u32 %v861, 16
        %v891 = vrot.slane %v889, 5
        %v892 = vsel %vm878, %v887, %v891
        %v894 = vshrl.u32 %v862, 16
        %v896 = vrot.slane %v894, 4
        %v897 = vshll.u32 %v862, 16
        %v899 = vrot.slane %v897, 5
        %v900 = vor.u32 %v896, %v899
        %v901 = vrot.slane %v900, 4
        %v903 = vshll.u32 %v863, 16
        %v905 = vrot.slane %v903, 5
        %v906 = vsel %vm878, %v901, %v905
        %v908 = vshrl.u32 %v864, 16
        %v910 = vrot.slane %v908, 4
        %v911 = vshll.u32 %v864, 16
        %v913 = vrot.slane %v911, 5
        %v914 = vor.u32 %v910, %v913
        %v915 = vrot.slane %v914, 4
        %v917 = vshll.u32 %v865, 16
        %v919 = vrot.slane %v917, 5
        %v920 = vsel %vm878, %v915, %v919
        %v922 = vshrl.u32 %v866, 16
        %v924 = vrot.slane %v922, 4
        %v925 = vshll.u32 %v866, 16
        %v927 = vrot.slane %v925, 5
        %v928 = vor.u32 %v924, %v927
        %v929 = vrot.slane %v928, 4
        %v931 = vshll.u32 %v867, 16
        %v933 = vrot.slane %v931, 5
        %v934 = vsel %vm878, %v929, %v933
        %v936 = vshrl.u32 %v868, 16
        %v938 = vrot.slane %v936, 4
        %v939 = vshll.u32 %v868, 16
        %v941 = vrot.slane %v939, 5
        %v942 = vor.u32 %v938, %v941
        %v943 = vrot.slane %v942, 4
        %v945 = vshll.u32 %v869, 16
        %v947 = vrot.slane %v945, 5
        %v948 = vsel %vm878, %v943, %v947
        %v950 = vshrl.u32 %v870, 16
        %v952 = vrot.slane %v950, 4
        %v953 = vshll.u32 %v870, 16
        %v955 = vrot.slane %v953, 5
        %v956 = vor.u32 %v952, %v955
        %v957 = vrot.slane %v956, 4
        %v959 = vshll.u32 %v871, 16
        %v961 = vrot.slane %v959, 5
        %v962 = vsel %vm878, %v957, %v961
        %v964 = vshrl.u32 %v872, 16
        %v966 = vrot.slane %v964, 4
        %v967 = vshll.u32 %v872, 16
        %v969 = vrot.slane %v967, 5
        %v970 = vor.u32 %v966, %v969
        %v971 = vrot.slane %v970, 4
        %v973 = vshll.u32 %v873, 16
        %v975 = vrot.slane %v973, 5
        %v976 = vsel %vm878, %v971, %v975
        %v978 = vshrl.u32 %v874, 16
        %v980 = vrot.slane %v978, 4
        %v981 = vshll.u32 %v874, 16
        %v983 = vrot.slane %v981, 5
        %v984 = vor.u32 %v980, %v983
        %v985 = vrot.slane %v984, 4
        %v987 = vshll.u32 %v875, 16
        %v989 = vrot.slane %v987, 5
        %v990 = vsel %vm878, %v985, %v989
        %s991 = scalar_lea.vmem %s3, 16
        %v992 = vld [vmem:[%s991] sm:$0xf]
        %v993 = vld [vmem:[%s991 + $0x4] sm:$0xf]
        %v994 = vunpack.c.l.b16 %v892
        %v995 = vunpack.c.l.b16 %v906
        %v996 = vunpack.c.l.b16 %v920
        %v997 = vunpack.c.l.b16 %v934
        %v998 = vunpack.c.l.b16 %v948
        %v999 = vunpack.c.l.b16 %v962
        %v1000 = vunpack.c.l.b16 %v976
        %v1001 = vunpack.c.l.b16 %v990
        %v1002 = vpack.c.b16 %v995, %v994
        %v1003 = vpack.c.b16 %v997, %v996
        %v1004 = vpack.c.b16 %v999, %v998
        %v1005 = vpack.c.b16 %v1001, %v1000
        %v1008 = vunpack.c.l.b16 %v992
        %v1009 = vunpack.c.l.b16 %v993
        %v1010 = vpack.c.b16 %v1009, %v1008
        %v1013 = vsel %vm687, %v1002, 0
        %v1016 = vsel %vm687, %v1003, 0
        %v1019 = vsel %vm687, %v1004, 0
        %v1022 = vsel %vm687, %v1005, 0
        %1024 = vmatprep.subr.bf16.mxu0 0
        %1025 = vmatpush1.bf16.msra.mxu0 %v1010
        %1026 = vmatprep.subr.bf16.mxu0 0
        %1027 = vmatpush1.bf16.msra.mxu0 0
        %1028 = vmatprep.subr.bf16.mxu0 0
        %1029 = vmatpush1.bf16.msra.mxu0 0
        %1030 = vmatprep.subr.bf16.mxu0 0
        %1031 = vmatpush1.bf16.msra.mxu0 0
        %1032 = vmatprep.subr.bf16.mxu0 0
        %1033 = vmatpush1.bf16.msra.mxu0 0
        %1034 = vmatprep.subr.bf16.mxu0 0
        %1035 = vmatpush1.bf16.msra.mxu0 0
        %1036 = vmatprep.subr.bf16.mxu0 0
        %1037 = vmatpush1.bf16.msra.mxu0 0
        %1038 = vmatprep.subr.bf16.mxu0 0
        %1039 = vmatpush1.bf16.msra.mxu0 0
        %1040 = vmatprep.subr.bf16.mxu0 0
        %1041 = vmatpush1.bf16.msra.mxu0 0
        %1042 = vmatprep.subr.bf16.mxu0 0
        %1043 = vmatpush1.bf16.msra.mxu0 0
        %1044 = vmatprep.subr.bf16.mxu0 0
        %1045 = vmatpush1.bf16.msra.mxu0 0
        %1046 = vmatprep.subr.bf16.mxu0 0
        %1047 = vmatpush1.bf16.msra.mxu0 0
        %1048 = vmatprep.subr.bf16.mxu0 0
        %1049 = vmatpush1.bf16.msra.mxu0 0
        %1050 = vmatprep.subr.bf16.mxu0 0
        %1051 = vmatpush1.bf16.msra.mxu0 0
        %1052 = vmatprep.subr.bf16.mxu0 0
        %1053 = vmatpush1.bf16.msra.mxu0 0
        %1054 = vmatprep.subr.bf16.mxu0 0
        %1055 = vmatpush1.bf16.msra.mxu0 0
        %1056 = vmatprep.mubr.bf16.mxu0 0
        %1057 = vmatmul.mubr.bf16.gmra.mrb[0].mxu0 %v1013
        %v1058 = vpop.f32.mrb[0].mxu0
        %v1059 = vadd.f32 0.0, %v1058
        %v1060 = vpop.f32.mrb[0].mxu0
        %v1061 = vpop.f32.mrb[0].mxu0
        %v1062 = vadd.f32 0.0, %v1061
        %v1063 = vpop.f32.mrb[0].mxu0
        %1064 = vmatprep.mubr.bf16.mxu0 0
        %1065 = vmatmul.mubr.bf16.gmra.mrb[0].mxu0 %v1016
        %v1066 = vpop.f32.mrb[0].mxu0
        %v1067 = vadd.f32 0.0, %v1066
        %v1068 = vpop.f32.mrb[0].mxu0
        %v1069 = vpop.f32.mrb[0].mxu0
        %v1070 = vadd.f32 0.0, %v1069
        %v1071 = vpop.f32.mrb[0].mxu0
        %1072 = vmatprep.mubr.bf16.mxu0 0
        %1073 = vmatmul.mubr.bf16.gmra.mrb[0].mxu0 %v1019
        %v1074 = vpop.f32.mrb[0].mxu0
        %v1075 = vadd.f32 0.0, %v1074
        %v1076 = vpop.f32.mrb[0].mxu0
        %v1077 = vpop.f32.mrb[0].mxu0
        %v1078 = vadd.f32 0.0, %v1077
        %v1079 = vpop.f32.mrb[0].mxu0
        %1080 = vmatprep.mubr.bf16.mxu0 0
        %1081 = vmatmul.mubr.bf16.gmra.mrb[0].mxu0 %v1022
        %v1082 = vpop.f32.mrb[0].mxu0
        %v1083 = vadd.f32 0.0, %v1082
        %v1084 = vpop.f32.mrb[0].mxu0
        %v1085 = vpop.f32.mrb[0].mxu0
        %v1086 = vadd.f32 0.0, %v1085
        %v1087 = vpop.f32.mrb[0].mxu0
        %1088 = vdwg.mxu0
        %v1089 = vadd.f32 %v830, %v1059
        %v1090 = vadd.f32 %v833, %v1062
        %v1091 = vadd.f32 %v838, %v1067
        %v1092 = vadd.f32 %v841, %v1070
        %v1093 = vadd.f32 %v846, %v1075
        %v1094 = vadd.f32 %v849, %v1078
        %v1095 = vadd.f32 %v854, %v1083
        %v1096 = vadd.f32 %v857, %v1086
        %v1097 = vld [vmem:[%s439] sm:$0x8]
        %v1098 = vld [vmem:[%s439 + $0x4] sm:$0xf]
        %v1099 = vld [vmem:[%s439 + $0xc] sm:$0x8]
        %v1100 = vld [vmem:[%s439 + $0x10] sm:$0xf]
        %v1101 = vld [vmem:[%s439 + $0x18] sm:$0x8]
        %v1102 = vld [vmem:[%s439 + $0x1c] sm:$0xf]
        %v1103 = vld [vmem:[%s439 + $0x24] sm:$0x8]
        %v1104 = vld [vmem:[%s439 + $0x28] sm:$0xf]
        %v1105 = vld [vmem:[%s439 + $0x30] sm:$0x8]
        %v1106 = vld [vmem:[%s439 + $0x34] sm:$0xf]
        %v1107 = vld [vmem:[%s439 + $0x3c] sm:$0x8]
        %v1108 = vld [vmem:[%s439 + $0x40] sm:$0xf]
        %v1109 = vld [vmem:[%s439 + $0x48] sm:$0x8]
        %v1110 = vld [vmem:[%s439 + $0x4c] sm:$0xf]
        %v1111 = vld [vmem:[%s439 + $0x54] sm:$0x8]
        %v1112 = vld [vmem:[%s439 + $0x58] sm:$0xf]
        %v1114 = vshrl.u32 %v1097, 16
        %v1116 = vrot.slane %v1114, 7
        %v1117 = vrot.slane %v1116, 4
        %v1119 = vshrl.u32 %v1098, 16
        %v1121 = vrot.slane %v1119, 7
        %v1122 = vshll.u32 %v1098, 16
        %v1124 = vor.u32 %v1121, %v1122
        %v1125 = vsel %vm551, %v1117, %v1124
        %v1127 = vshrl.u32 %v1099, 16
        %v1129 = vrot.slane %v1127, 7
        %v1130 = vrot.slane %v1129, 4
        %v1132 = vshrl.u32 %v1100, 16
        %v1134 = vrot.slane %v1132, 7
        %v1135 = vshll.u32 %v1100, 16
        %v1137 = vor.u32 %v1134, %v1135
        %v1138 = vsel %vm551, %v1130, %v1137
        %v1140 = vshrl.u32 %v1101, 16
        %v1142 = vrot.slane %v1140, 7
        %v1143 = vrot.slane %v1142, 4
        %v1145 = vshrl.u32 %v1102, 16
        %v1147 = vrot.slane %v1145, 7
        %v1148 = vshll.u32 %v1102, 16
        %v1150 = vor.u32 %v1147, %v1148
        %v1151 = vsel %vm551, %v1143, %v1150
        %v1153 = vshrl.u32 %v1103, 16
        %v1155 = vrot.slane %v1153, 7
        %v1156 = vrot.slane %v1155, 4
        %v1158 = vshrl.u32 %v1104, 16
        %v1160 = vrot.slane %v1158, 7
        %v1161 = vshll.u32 %v1104, 16
        %v1163 = vor.u32 %v1160, %v1161
        %v1164 = vsel %vm551, %v1156, %v1163
        %v1166 = vshrl.u32 %v1105, 16
        %v1168 = vrot.slane %v1166, 7
        %v1169 = vrot.slane %v1168, 4
        %v1171 = vshrl.u32 %v1106, 16
        %v1173 = vrot.slane %v1171, 7
        %v1174 = vshll.u32 %v1106, 16
        %v1176 = vor.u32 %v1173, %v1174
        %v1177 = vsel %vm551, %v1169, %v1176
        %v1179 = vshrl.u32 %v1107, 16
        %v1181 = vrot.slane %v1179, 7
        %v1182 = vrot.slane %v1181, 4
        %v1184 = vshrl.u32 %v1108, 16
        %v1186 = vrot.slane %v1184, 7
        %v1187 = vshll.u32 %v1108, 16
        %v1189 = vor.u32 %v1186, %v1187
        %v1190 = vsel %vm551, %v1182, %v1189
        %v1192 = vshrl.u32 %v1109, 16
        %v1194 = vrot.slane %v1192, 7
        %v1195 = vrot.slane %v1194, 4
        %v1197 = vshrl.u32 %v1110, 16
        %v1199 = vrot.slane %v1197, 7
        %v1200 = vshll.u32 %v1110, 16
        %v1202 = vor.u32 %v1199, %v1200
        %v1203 = vsel %vm551, %v1195, %v1202
        %v1205 = vshrl.u32 %v1111, 16
        %v1207 = vrot.slane %v1205, 7
        %v1208 = vrot.slane %v1207, 4
        %v1210 = vshrl.u32 %v1112, 16
        %v1212 = vrot.slane %v1210, 7
        %v1213 = vshll.u32 %v1112, 16
        %v1215 = vor.u32 %v1212, %v1213
        %v1216 = vsel %vm551, %v1208, %v1215
        %s1217 = scalar_lea.vmem %s3, 24
        %v1218 = vld [vmem:[%s1217] sm:$0xf]
        %v1219 = vld [vmem:[%s1217 + $0x4] sm:$0xf]
        %v1220 = vunpack.c.l.b16 %v1125
        %v1221 = vunpack.c.l.b16 %v1138
        %v1222 = vunpack.c.l.b16 %v1151
        %v1223 = vunpack.c.l.b16 %v1164
        %v1224 = vunpack.c.l.b16 %v1177
        %v1225 = vunpack.c.l.b16 %v1190
        %v1226 = vunpack.c.l.b16 %v1203
        %v1227 = vunpack.c.l.b16 %v1216
        %v1228 = vpack.c.b16 %v1221, %v1220
        %v1229 = vpack.c.b16 %v1223, %v1222
        %v1230 = vpack.c.b16 %v1225, %v1224
        %v1231 = vpack.c.b16 %v1227, %v1226
        %v1234 = vunpack.c.l.b16 %v1218
        %v1235 = vunpack.c.l.b16 %v1219
        %v1236 = vpack.c.b16 %v1235, %v1234
        %v1239 = vsel %vm687, %v1228, 0
        %v1242 = vsel %vm687, %v1229, 0
        %v1245 = vsel %vm687, %v1230, 0
        %v1248 = vsel %vm687, %v1231, 0
        %1250 = vmatprep.subr.bf16.mxu0 0
        %1251 = vmatpush1.bf16.msra.mxu0 %v1236
        %1252 = vmatprep.subr.bf16.mxu0 0
        %1253 = vmatpush1.bf16.msra.mxu0 0
        %1254 = vmatprep.subr.bf16.mxu0 0
        %1255 = vmatpush1.bf16.msra.mxu0 0
        %1256 = vmatprep.subr.bf16.mxu0 0
        %1257 = vmatpush1.bf16.msra.mxu0 0
        %1258 = vmatprep.subr.bf16.mxu0 0
        %1259 = vmatpush1.bf16.msra.mxu0 0
        %1260 = vmatprep.subr.bf16.mxu0 0
        %1261 = vmatpush1.bf16.msra.mxu0 0
        %1262 = vmatprep.subr.bf16.mxu0 0
        %1263 = vmatpush1.bf16.msra.mxu0 0
        %1264 = vmatprep.subr.bf16.mxu0 0
        %1265 = vmatpush1.bf16.msra.mxu0 0
        %1266 = vmatprep.subr.bf16.mxu0 0
        %1267 = vmatpush1.bf16.msra.mxu0 0
        %1268 = vmatprep.subr.bf16.mxu0 0
        %1269 = vmatpush1.bf16.msra.mxu0 0
        %1270 = vmatprep.subr.bf16.mxu0 0
        %1271 = vmatpush1.bf16.msra.mxu0 0
        %1272 = vmatprep.subr.bf16.mxu0 0
        %1273 = vmatpush1.bf16.msra.mxu0 0
        %1274 = vmatprep.subr.bf16.mxu0 0
        %1275 = vmatpush1.bf16.msra.mxu0 0
        %1276 = vmatprep.subr.bf16.mxu0 0
        %1277 = vmatpush1.bf16.msra.mxu0 0
        %1278 = vmatprep.subr.bf16.mxu0 0
        %1279 = vmatpush1.bf16.msra.mxu0 0
        %1280 = vmatprep.subr.bf16.mxu0 0
        %1281 = vmatpush1.bf16.msra.mxu0 0
        %1282 = vmatprep.mubr.bf16.mxu0 0
        %1283 = vmatmul.mubr.bf16.gmra.mrb[0].mxu0 %v1239
        %v1284 = vpop.f32.mrb[0].mxu0
        %v1285 = vadd.f32 0.0, %v1284
        %v1286 = vpop.f32.mrb[0].mxu0
        %v1287 = vpop.f32.mrb[0].mxu0
        %v1288 = vadd.f32 0.0, %v1287
        %v1289 = vpop.f32.mrb[0].mxu0
        %1290 = vmatprep.mubr.bf16.mxu0 0
        %1291 = vmatmul.mubr.bf16.gmra.mrb[0].mxu0 %v1242
        %v1292 = vpop.f32.mrb[0].mxu0
        %v1293 = vadd.f32 0.0, %v1292
        %v1294 = vpop.f32.mrb[0].mxu0
        %v1295 = vpop.f32.mrb[0].mxu0
        %v1296 = vadd.f32 0.0, %v1295
        %v1297 = vpop.f32.mrb[0].mxu0
        %1298 = vmatprep.mubr.bf16.mxu0 0
        %1299 = vmatmul.mubr.bf16.gmra.mrb[0].mxu0 %v1245
        %v1300 = vpop.f32.mrb[0].mxu0
        %v1301 = vadd.f32 0.0, %v1300
        %v1302 = vpop.f32.mrb[0].mxu0
        %v1303 = vpop.f32.mrb[0].mxu0
        %v1304 = vadd.f32 0.0, %v1303
        %v1305 = vpop.f32.mrb[0].mxu0
        %1306 = vmatprep.mubr.bf16.mxu0 0
        %1307 = vmatmul.mubr.bf16.gmra.mrb[0].mxu0 %v1248
        %v1308 = vpop.f32.mrb[0].mxu0
        %v1309 = vadd.f32 0.0, %v1308
        %v1310 = vpop.f32.mrb[0].mxu0
        %v1311 = vpop.f32.mrb[0].mxu0
        %v1312 = vadd.f32 0.0, %v1311
        %v1313 = vpop.f32.mrb[0].mxu0
        %1314 = vdwg.mxu0
        %v1315 = vadd.f32 %v1089, %v1285
        %v1316 = vadd.f32 %v1090, %v1288
        %v1317 = vadd.f32 %v1091, %v1293
        %v1318 = vadd.f32 %v1092, %v1296
        %v1319 = vadd.f32 %v1093, %v1301
        %v1320 = vadd.f32 %v1094, %v1304
        %v1321 = vadd.f32 %v1095, %v1309
        %v1322 = vadd.f32 %v1096, %v1312
        %s1323 = scalar_lea.vmem %s3, 32
        %v1324 = vld [vmem:[%s1323] sm:$0xf]
        %v1325 = vld [vmem:[%s1323 + $0x4] sm:$0xf]
        %v1334 = vunpack.c.l.b16 %v1098
        %v1335 = vunpack.c.l.b16 %v1100
        %v1336 = vunpack.c.l.b16 %v1102
        %v1337 = vunpack.c.l.b16 %v1104
        %v1338 = vunpack.c.l.b16 %v1106
        %v1339 = vunpack.c.l.b16 %v1108
        %v1340 = vunpack.c.l.b16 %v1110
        %v1341 = vunpack.c.l.b16 %v1112
        %v1342 = vpack.c.b16 %v1335, %v1334
        %v1343 = vpack.c.b16 %v1337, %v1336
        %v1344 = vpack.c.b16 %v1339, %v1338
        %v1345 = vpack.c.b16 %v1341, %v1340
        %v1348 = vunpack.c.l.b16 %v1324
        %v1349 = vunpack.c.l.b16 %v1325
        %v1350 = vpack.c.b16 %v1349, %v1348
        %v1353 = vsel %vm687, %v1342, 0
        %v1356 = vsel %vm687, %v1343, 0
        %v1359 = vsel %vm687, %v1344, 0
        %v1362 = vsel %vm687, %v1345, 0
        %1364 = vmatprep.subr.bf16.mxu0 0
        %1365 = vmatpush1.bf16.msra.mxu0 %v1350
        %1366 = vmatprep.subr.bf16.mxu0 0
        %1367 = vmatpush1.bf16.msra.mxu0 0
        %1368 = vmatprep.subr.bf16.mxu0 0
        %1369 = vmatpush1.bf16.msra.mxu0 0
        %1370 = vmatprep.subr.bf16.mxu0 0
        %1371 = vmatpush1.bf16.msra.mxu0 0
        %1372 = vmatprep.subr.bf16.mxu0 0
        %1373 = vmatpush1.bf16.msra.mxu0 0
        %1374 = vmatprep.subr.bf16.mxu0 0
        %1375 = vmatpush1.bf16.msra.mxu0 0
        %1376 = vmatprep.subr.bf16.mxu0 0
        %1377 = vmatpush1.bf16.msra.mxu0 0
        %1378 = vmatprep.subr.bf16.mxu0 0
        %1379 = vmatpush1.bf16.msra.mxu0 0
        %1380 = vmatprep.subr.bf16.mxu0 0
        %1381 = vmatpush1.bf16.msra.mxu0 0
        %1382 = vmatprep.subr.bf16.mxu0 0
        %1383 = vmatpush1.bf16.msra.mxu0 0
        %1384 = vmatprep.subr.bf16.mxu0 0
        %1385 = vmatpush1.bf16.msra.mxu0 0
        %1386 = vmatprep.subr.bf16.mxu0 0
        %1387 = vmatpush1.bf16.msra.mxu0 0
        %1388 = vmatprep.subr.bf16.mxu0 0
        %1389 = vmatpush1.bf16.msra.mxu0 0
        %1390 = vmatprep.subr.bf16.mxu0 0
        %1391 = vmatpush1.bf16.msra.mxu0 0
        %1392 = vmatprep.subr.bf16.mxu0 0
        %1393 = vmatpush1.bf16.msra.mxu0 0
        %1394 = vmatprep.subr.bf16.mxu0 0
        %1395 = vmatpush1.bf16.msra.mxu0 0
        %1396 = vmatprep.mubr.bf16.mxu0 0
        %1397 = vmatmul.mubr.bf16.gmra.mrb[0].mxu0 %v1353
        %v1398 = vpop.f32.mrb[0].mxu0
        %v1399 = vadd.f32 0.0, %v1398
        %v1400 = vpop.f32.mrb[0].mxu0
        %v1401 = vpop.f32.mrb[0].mxu0
        %v1402 = vadd.f32 0.0, %v1401
        %v1403 = vpop.f32.mrb[0].mxu0
        %1404 = vmatprep.mubr.bf16.mxu0 0
        %1405 = vmatmul.mubr.bf16.gmra.mrb[0].mxu0 %v1356
        %v1406 = vpop.f32.mrb[0].mxu0
        %v1407 = vadd.f32 0.0, %v1406
        %v1408 = vpop.f32.mrb[0].mxu0
        %v1409 = vpop.f32.mrb[0].mxu0
        %v1410 = vadd.f32 0.0, %v1409
        %v1411 = vpop.f32.mrb[0].mxu0
        %1412 = vmatprep.mubr.bf16.mxu0 0
        %1413 = vmatmul.mubr.bf16.gmra.mrb[0].mxu0 %v1359
        %v1414 = vpop.f32.mrb[0].mxu0
        %v1415 = vadd.f32 0.0, %v1414
        %v1416 = vpop.f32.mrb[0].mxu0
        %v1417 = vpop.f32.mrb[0].mxu0
        %v1418 = vadd.f32 0.0, %v1417
        %v1419 = vpop.f32.mrb[0].mxu0
        %1420 = vmatprep.mubr.bf16.mxu0 0
        %1421 = vmatmul.mubr.bf16.gmra.mrb[0].mxu0 %v1362
        %v1422 = vpop.f32.mrb[0].mxu0
        %v1423 = vadd.f32 0.0, %v1422
        %v1424 = vpop.f32.mrb[0].mxu0
        %v1425 = vpop.f32.mrb[0].mxu0
        %v1426 = vadd.f32 0.0, %v1425
        %v1427 = vpop.f32.mrb[0].mxu0
        %1428 = vdwg.mxu0
        %v1429 = vadd.f32 %v1315, %v1399
        %v1430 = vadd.f32 %v1316, %v1402
        %v1431 = vadd.f32 %v1317, %v1407
        %v1432 = vadd.f32 %v1318, %v1410
        %v1433 = vadd.f32 %v1319, %v1415
        %v1434 = vadd.f32 %v1320, %v1418
        %v1435 = vadd.f32 %v1321, %v1423
        %v1436 = vadd.f32 %v1322, %v1426
        %v1437 = vld [vmem:[%s439 + $0x4] sm:$0xf]
        %v1438 = vld [vmem:[%s439 + $0x8] sm:$0x1]
        %v1439 = vld [vmem:[%s439 + $0x10] sm:$0xf]
        %v1440 = vld [vmem:[%s439 + $0x14] sm:$0x1]
        %v1441 = vld [vmem:[%s439 + $0x1c] sm:$0xf]
        %v1442 = vld [vmem:[%s439 + $0x20] sm:$0x1]
        %v1443 = vld [vmem:[%s439 + $0x28] sm:$0xf]
        %v1444 = vld [vmem:[%s439 + $0x2c] sm:$0x1]
        %v1445 = vld [vmem:[%s439 + $0x34] sm:$0xf]
        %v1446 = vld [vmem:[%s439 + $0x38] sm:$0x1]
        %v1447 = vld [vmem:[%s439 + $0x40] sm:$0xf]
        %v1448 = vld [vmem:[%s439 + $0x44] sm:$0x1]
        %v1449 = vld [vmem:[%s439 + $0x4c] sm:$0xf]
        %v1450 = vld [vmem:[%s439 + $0x50] sm:$0x1]
        %v1451 = vld [vmem:[%s439 + $0x58] sm:$0xf]
        %v1452 = vld [vmem:[%s439 + $0x5c] sm:$0x1]
        %v1454 = vshrl.u32 %v1437, 16
        %v1456 = vrot.slane %v1454, 4
        %v1457 = vshll.u32 %v1437, 16
        %v1459 = vrot.slane %v1457, 5
        %v1460 = vor.u32 %v1456, %v1459
        %v1461 = vrot.slane %v1460, 4
        %v1463 = vshll.u32 %v1438, 16
        %v1465 = vrot.slane %v1463, 5
        %v1466 = vsel %vm878, %v1461, %v1465
        %v1468 = vshrl.u32 %v1439, 16
        %v1470 = vrot.slane %v1468, 4
        %v1471 = vshll.u32 %v1439, 16
        %v1473 = vrot.slane %v1471, 5
        %v1474 = vor.u32 %v1470, %v1473
        %v1475 = vrot.slane %v1474, 4
        %v1477 = vshll.u32 %v1440, 16
        %v1479 = vrot.slane %v1477, 5
        %v1480 = vsel %vm878, %v1475, %v1479
        %v1482 = vshrl.u32 %v1441, 16
        %v1484 = vrot.slane %v1482, 4
        %v1485 = vshll.u32 %v1441, 16
        %v1487 = vrot.slane %v1485, 5
        %v1488 = vor.u32 %v1484, %v1487
        %v1489 = vrot.slane %v1488, 4
        %v1491 = vshll.u32 %v1442, 16
        %v1493 = vrot.slane %v1491, 5
        %v1494 = vsel %vm878, %v1489, %v1493
        %v1496 = vshrl.u32 %v1443, 16
        %v1498 = vrot.slane %v1496, 4
        %v1499 = vshll.u32 %v1443, 16
        %v1501 = vrot.slane %v1499, 5
        %v1502 = vor.u32 %v1498, %v1501
        %v1503 = vrot.slane %v1502, 4
        %v1505 = vshll.u32 %v1444, 16
        %v1507 = vrot.slane %v1505, 5
        %v1508 = vsel %vm878, %v1503, %v1507
        %v1510 = vshrl.u32 %v1445, 16
        %v1512 = vrot.slane %v1510, 4
        %v1513 = vshll.u32 %v1445, 16
        %v1515 = vrot.slane %v1513, 5
        %v1516 = vor.u32 %v1512, %v1515
        %v1517 = vrot.slane %v1516, 4
        %v1519 = vshll.u32 %v1446, 16
        %v1521 = vrot.slane %v1519, 5
        %v1522 = vsel %vm878, %v1517, %v1521
        %v1524 = vshrl.u32 %v1447, 16
        %v1526 = vrot.slane %v1524, 4
        %v1527 = vshll.u32 %v1447, 16
        %v1529 = vrot.slane %v1527, 5
        %v1530 = vor.u32 %v1526, %v1529
        %v1531 = vrot.slane %v1530, 4
        %v1533 = vshll.u32 %v1448, 16
        %v1535 = vrot.slane %v1533, 5
        %v1536 = vsel %vm878, %v1531, %v1535
        %v1538 = vshrl.u32 %v1449, 16
        %v1540 = vrot.slane %v1538, 4
        %v1541 = vshll.u32 %v1449, 16
        %v1543 = vrot.slane %v1541, 5
        %v1544 = vor.u32 %v1540, %v1543
        %v1545 = vrot.slane %v1544, 4
        %v1547 = vshll.u32 %v1450, 16
        %v1549 = vrot.slane %v1547, 5
        %v1550 = vsel %vm878, %v1545, %v1549
        %v1552 = vshrl.u32 %v1451, 16
        %v1554 = vrot.slane %v1552, 4
        %v1555 = vshll.u32 %v1451, 16
        %v1557 = vrot.slane %v1555, 5
        %v1558 = vor.u32 %v1554, %v1557
        %v1559 = vrot.slane %v1558, 4
        %v1561 = vshll.u32 %v1452, 16
        %v1563 = vrot.slane %v1561, 5
        %v1564 = vsel %vm878, %v1559, %v1563
        %s1565 = scalar_lea.vmem %s3, 40
        %v1566 = vld [vmem:[%s1565] sm:$0xf]
        %v1567 = vld [vmem:[%s1565 + $0x4] sm:$0xf]
        %v1568 = vunpack.c.l.b16 %v1466
        %v1569 = vunpack.c.l.b16 %v1480
        %v1570 = vunpack.c.l.b16 %v1494
        %v1571 = vunpack.c.l.b16 %v1508
        %v1572 = vunpack.c.l.b16 %v1522
        %v1573 = vunpack.c.l.b16 %v1536
        %v1574 = vunpack.c.l.b16 %v1550
        %v1575 = vunpack.c.l.b16 %v1564
        %v1576 = vpack.c.b16 %v1569, %v1568
        %v1577 = vpack.c.b16 %v1571, %v1570
        %v1578 = vpack.c.b16 %v1573, %v1572
        %v1579 = vpack.c.b16 %v1575, %v1574
        %v1582 = vunpack.c.l.b16 %v1566
        %v1583 = vunpack.c.l.b16 %v1567
        %v1584 = vpack.c.b16 %v1583, %v1582
        %v1587 = vsel %vm687, %v1576, 0
        %v1590 = vsel %vm687, %v1577, 0
        %v1593 = vsel %vm687, %v1578, 0
        %v1596 = vsel %vm687, %v1579, 0
        %1598 = vmatprep.subr.bf16.mxu0 0
        %1599 = vmatpush1.bf16.msra.mxu0 %v1584
        %1600 = vmatprep.subr.bf16.mxu0 0
        %1601 = vmatpush1.bf16.msra.mxu0 0
        %1602 = vmatprep.subr.bf16.mxu0 0
        %1603 = vmatpush1.bf16.msra.mxu0 0
        %1604 = vmatprep.subr.bf16.mxu0 0
        %1605 = vmatpush1.bf16.msra.mxu0 0
        %1606 = vmatprep.subr.bf16.mxu0 0
        %1607 = vmatpush1.bf16.msra.mxu0 0
        %1608 = vmatprep.subr.bf16.mxu0 0
        %1609 = vmatpush1.bf16.msra.mxu0 0
        %1610 = vmatprep.subr.bf16.mxu0 0
        %1611 = vmatpush1.bf16.msra.mxu0 0
        %1612 = vmatprep.subr.bf16.mxu0 0
        %1613 = vmatpush1.bf16.msra.mxu0 0
        %1614 = vmatprep.subr.bf16.mxu0 0
        %1615 = vmatpush1.bf16.msra.mxu0 0
        %1616 = vmatprep.subr.bf16.mxu0 0
        %1617 = vmatpush1.bf16.msra.mxu0 0
        %1618 = vmatprep.subr.bf16.mxu0 0
        %1619 = vmatpush1.bf16.msra.mxu0 0
        %1620 = vmatprep.subr.bf16.mxu0 0
        %1621 = vmatpush1.bf16.msra.mxu0 0
        %1622 = vmatprep.subr.bf16.mxu0 0
        %1623 = vmatpush1.bf16.msra.mxu0 0
        %1624 = vmatprep.subr.bf16.mxu0 0
        %1625 = vmatpush1.bf16.msra.mxu0 0
        %1626 = vmatprep.subr.bf16.mxu0 0
        %1627 = vmatpush1.bf16.msra.mxu0 0
        %1628 = vmatprep.subr.bf16.mxu0 0
        %1629 = vmatpush1.bf16.msra.mxu0 0
        %1630 = vmatprep.mubr.bf16.mxu0 0
        %1631 = vmatmul.mubr.bf16.gmra.mrb[0].mxu0 %v1587
        %v1632 = vpop.f32.mrb[0].mxu0
        %v1633 = vadd.f32 0.0, %v1632
        %v1634 = vpop.f32.mrb[0].mxu0
        %v1635 = vpop.f32.mrb[0].mxu0
        %v1636 = vadd.f32 0.0, %v1635
        %v1637 = vpop.f32.mrb[0].mxu0
        %1638 = vmatprep.mubr.bf16.mxu0 0
        %1639 = vmatmul.mubr.bf16.gmra.mrb[0].mxu0 %v1590
        %v1640 = vpop.f32.mrb[0].mxu0
        %v1641 = vadd.f32 0.0, %v1640
        %v1642 = vpop.f32.mrb[0].mxu0
        %v1643 = vpop.f32.mrb[0].mxu0
        %v1644 = vadd.f32 0.0, %v1643
        %v1645 = vpop.f32.mrb[0].mxu0
        %1646 = vmatprep.mubr.bf16.mxu0 0
        %1647 = vmatmul.mubr.bf16.gmra.mrb[0].mxu0 %v1593
        %v1648 = vpop.f32.mrb[0].mxu0
        %v1649 = vadd.f32 0.0, %v1648
        %v1650 = vpop.f32.mrb[0].mxu0
        %v1651 = vpop.f32.mrb[0].mxu0
        %v1652 = vadd.f32 0.0, %v1651
        %v1653 = vpop.f32.mrb[0].mxu0
        %1654 = vmatprep.mubr.bf16.mxu0 0
        %1655 = vmatmul.mubr.bf16.gmra.mrb[0].mxu0 %v1596
        %v1656 = vpop.f32.mrb[0].mxu0
        %v1657 = vadd.f32 0.0, %v1656
        %v1658 = vpop.f32.mrb[0].mxu0
        %v1659 = vpop.f32.mrb[0].mxu0
        %v1660 = vadd.f32 0.0, %v1659
        %v1661 = vpop.f32.mrb[0].mxu0
        %1662 = vdwg.mxu0
        %v1663 = vadd.f32 %v1429, %v1633
        %v1664 = vadd.f32 %v1430, %v1636
        %v1665 = vadd.f32 %v1431, %v1641
        %v1666 = vadd.f32 %v1432, %v1644
        %v1667 = vadd.f32 %v1433, %v1649
        %v1668 = vadd.f32 %v1434, %v1652
        %v1669 = vadd.f32 %v1435, %v1657
        %v1670 = vadd.f32 %v1436, %v1660
        %s1671 = scalar_lea.vmem [#allocation2], 24
        %v1672 = vld [vmem:[%s1671] sm:$0x8]
        %v1673 = vld [vmem:[%s1671 + $0x4] sm:$0xf]
        %v1674 = vld [vmem:[%s1671 + $0xc] sm:$0x8]
        %v1675 = vld [vmem:[%s1671 + $0x10] sm:$0xf]
        %v1676 = vld [vmem:[%s1671 + $0x18] sm:$0x8]
        %v1677 = vld [vmem:[%s1671 + $0x1c] sm:$0xf]
        %v1678 = vld [vmem:[%s1671 + $0x24] sm:$0x8]
        %v1679 = vld [vmem:[%s1671 + $0x28] sm:$0xf]
        %v1680 = vld [vmem:[%s1671 + $0x30] sm:$0x8]
        %v1681 = vld [vmem:[%s1671 + $0x34] sm:$0xf]
        %v1682 = vld [vmem:[%s1671 + $0x3c] sm:$0x8]
        %v1683 = vld [vmem:[%s1671 + $0x40] sm:$0xf]
        %v1684 = vld [vmem:[%s1671 + $0x48] sm:$0x8]
        %v1685 = vld [vmem:[%s1671 + $0x4c] sm:$0xf]
        %v1686 = vld [vmem:[%s1671 + $0x54] sm:$0x8]
        %v1687 = vld [vmem:[%s1671 + $0x58] sm:$0xf]
        %v1689 = vshrl.u32 %v1672, 16
        %v1691 = vrot.slane %v1689, 7
        %v1692 = vrot.slane %v1691, 4
        %v1694 = vshrl.u32 %v1673, 16
        %v1696 = vrot.slane %v1694, 7
        %v1697 = vshll.u32 %v1673, 16
        %v1699 = vor.u32 %v1696, %v1697
        %v1700 = vsel %vm551, %v1692, %v1699
        %v1702 = vshrl.u32 %v1674, 16
        %v1704 = vrot.slane %v1702, 7
        %v1705 = vrot.slane %v1704, 4
        %v1707 = vshrl.u32 %v1675, 16
        %v1709 = vrot.slane %v1707, 7
        %v1710 = vshll.u32 %v1675, 16
        %v1712 = vor.u32 %v1709, %v1710
        %v1713 = vsel %vm551, %v1705, %v1712
        %v1715 = vshrl.u32 %v1676, 16
        %v1717 = vrot.slane %v1715, 7
        %v1718 = vrot.slane %v1717, 4
        %v1720 = vshrl.u32 %v1677, 16
        %v1722 = vrot.slane %v1720, 7
        %v1723 = vshll.u32 %v1677, 16
        %v1725 = vor.u32 %v1722, %v1723
        %v1726 = vsel %vm551, %v1718, %v1725
        %v1728 = vshrl.u32 %v1678, 16
        %v1730 = vrot.slane %v1728, 7
        %v1731 = vrot.slane %v1730, 4
        %v1733 = vshrl.u32 %v1679, 16
        %v1735 = vrot.slane %v1733, 7
        %v1736 = vshll.u32 %v1679, 16
        %v1738 = vor.u32 %v1735, %v1736
        %v1739 = vsel %vm551, %v1731, %v1738
        %v1741 = vshrl.u32 %v1680, 16
        %v1743 = vrot.slane %v1741, 7
        %v1744 = vrot.slane %v1743, 4
        %v1746 = vshrl.u32 %v1681, 16
        %v1748 = vrot.slane %v1746, 7
        %v1749 = vshll.u32 %v1681, 16
        %v1751 = vor.u32 %v1748, %v1749
        %v1752 = vsel %vm551, %v1744, %v1751
        %v1754 = vshrl.u32 %v1682, 16
        %v1756 = vrot.slane %v1754, 7
        %v1757 = vrot.slane %v1756, 4
        %v1759 = vshrl.u32 %v1683, 16
        %v1761 = vrot.slane %v1759, 7
        %v1762 = vshll.u32 %v1683, 16
        %v1764 = vor.u32 %v1761, %v1762
        %v1765 = vsel %vm551, %v1757, %v1764
        %v1767 = vshrl.u32 %v1684, 16
        %v1769 = vrot.slane %v1767, 7
        %v1770 = vrot.slane %v1769, 4
        %v1772 = vshrl.u32 %v1685, 16
        %v1774 = vrot.slane %v1772, 7
        %v1775 = vshll.u32 %v1685, 16
        %v1777 = vor.u32 %v1774, %v1775
        %v1778 = vsel %vm551, %v1770, %v1777
        %v1780 = vshrl.u32 %v1686, 16
        %v1782 = vrot.slane %v1780, 7
        %v1783 = vrot.slane %v1782, 4
        %v1785 = vshrl.u32 %v1687, 16
        %v1787 = vrot.slane %v1785, 7
        %v1788 = vshll.u32 %v1687, 16
        %v1790 = vor.u32 %v1787, %v1788
        %v1791 = vsel %vm551, %v1783, %v1790
        %s1792 = scalar_lea.vmem %s3, 48
        %v1793 = vld [vmem:[%s1792] sm:$0xf]
        %v1794 = vld [vmem:[%s1792 + $0x4] sm:$0xf]
        %v1795 = vunpack.c.l.b16 %v1700
        %v1796 = vunpack.c.l.b16 %v1713
        %v1797 = vunpack.c.l.b16 %v1726
        %v1798 = vunpack.c.l.b16 %v1739
        %v1799 = vunpack.c.l.b16 %v1752
        %v1800 = vunpack.c.l.b16 %v1765
        %v1801 = vunpack.c.l.b16 %v1778
        %v1802 = vunpack.c.l.b16 %v1791
        %v1803 = vpack.c.b16 %v1796, %v1795
        %v1804 = vpack.c.b16 %v1798, %v1797
        %v1805 = vpack.c.b16 %v1800, %v1799
        %v1806 = vpack.c.b16 %v1802, %v1801
        %v1809 = vunpack.c.l.b16 %v1793
        %v1810 = vunpack.c.l.b16 %v1794
        %v1811 = vpack.c.b16 %v1810, %v1809
        %v1814 = vsel %vm687, %v1803, 0
        %v1817 = vsel %vm687, %v1804, 0
        %v1820 = vsel %vm687, %v1805, 0
        %v1823 = vsel %vm687, %v1806, 0
        %1825 = vmatprep.subr.bf16.mxu0 0
        %1826 = vmatpush1.bf16.msra.mxu0 %v1811
        %1827 = vmatprep.subr.bf16.mxu0 0
        %1828 = vmatpush1.bf16.msra.mxu0 0
        %1829 = vmatprep.subr.bf16.mxu0 0
        %1830 = vmatpush1.bf16.msra.mxu0 0
        %1831 = vmatprep.subr.bf16.mxu0 0
        %1832 = vmatpush1.bf16.msra.mxu0 0
        %1833 = vmatprep.subr.bf16.mxu0 0
        %1834 = vmatpush1.bf16.msra.mxu0 0
        %1835 = vmatprep.subr.bf16.mxu0 0
        %1836 = vmatpush1.bf16.msra.mxu0 0
        %1837 = vmatprep.subr.bf16.mxu0 0
        %1838 = vmatpush1.bf16.msra.mxu0 0
        %1839 = vmatprep.subr.bf16.mxu0 0
        %1840 = vmatpush1.bf16.msra.mxu0 0
        %1841 = vmatprep.subr.bf16.mxu0 0
        %1842 = vmatpush1.bf16.msra.mxu0 0
        %1843 = vmatprep.subr.bf16.mxu0 0
        %1844 = vmatpush1.bf16.msra.mxu0 0
        %1845 = vmatprep.subr.bf16.mxu0 0
        %1846 = vmatpush1.bf16.msra.mxu0 0
        %1847 = vmatprep.subr.bf16.mxu0 0
        %1848 = vmatpush1.bf16.msra.mxu0 0
        %1849 = vmatprep.subr.bf16.mxu0 0
        %1850 = vmatpush1.bf16.msra.mxu0 0
        %1851 = vmatprep.subr.bf16.mxu0 0
        %1852 = vmatpush1.bf16.msra.mxu0 0
        %1853 = vmatprep.subr.bf16.mxu0 0
        %1854 = vmatpush1.bf16.msra.mxu0 0
        %1855 = vmatprep.subr.bf16.mxu0 0
        %1856 = vmatpush1.bf16.msra.mxu0 0
        %1857 = vmatprep.mubr.bf16.mxu0 0
        %1858 = vmatmul.mubr.bf16.gmra.mrb[0].mxu0 %v1814
        %v1859 = vpop.f32.mrb[0].mxu0
        %v1860 = vadd.f32 0.0, %v1859
        %v1861 = vpop.f32.mrb[0].mxu0
        %v1862 = vpop.f32.mrb[0].mxu0
        %v1863 = vadd.f32 0.0, %v1862
        %v1864 = vpop.f32.mrb[0].mxu0
        %1865 = vmatprep.mubr.bf16.mxu0 0
        %1866 = vmatmul.mubr.bf16.gmra.mrb[0].mxu0 %v1817
        %v1867 = vpop.f32.mrb[0].mxu0
        %v1868 = vadd.f32 0.0, %v1867
        %v1869 = vpop.f32.mrb[0].mxu0
        %v1870 = vpop.f32.mrb[0].mxu0
        %v1871 = vadd.f32 0.0, %v1870
        %v1872 = vpop.f32.mrb[0].mxu0
        %1873 = vmatprep.mubr.bf16.mxu0 0
        %1874 = vmatmul.mubr.bf16.gmra.mrb[0].mxu0 %v1820
        %v1875 = vpop.f32.mrb[0].mxu0
        %v1876 = vadd.f32 0.0, %v1875
        %v1877 = vpop.f32.mrb[0].mxu0
        %v1878 = vpop.f32.mrb[0].mxu0
        %v1879 = vadd.f32 0.0, %v1878
        %v1880 = vpop.f32.mrb[0].mxu0
        %1881 = vmatprep.mubr.bf16.mxu0 0
        %1882 = vmatmul.mubr.bf16.gmra.mrb[0].mxu0 %v1823
        %v1883 = vpop.f32.mrb[0].mxu0
        %v1884 = vadd.f32 0.0, %v1883
        %v1885 = vpop.f32.mrb[0].mxu0
        %v1886 = vpop.f32.mrb[0].mxu0
        %v1887 = vadd.f32 0.0, %v1886
        %v1888 = vpop.f32.mrb[0].mxu0
        %1889 = vdwg.mxu0
        %v1890 = vadd.f32 %v1663, %v1860
        %v1891 = vadd.f32 %v1664, %v1863
        %v1892 = vadd.f32 %v1665, %v1868
        %v1893 = vadd.f32 %v1666, %v1871
        %v1894 = vadd.f32 %v1667, %v1876
        %v1895 = vadd.f32 %v1668, %v1879
        %v1896 = vadd.f32 %v1669, %v1884
        %v1897 = vadd.f32 %v1670, %v1887
        %s1898 = scalar_lea.vmem %s3, 56
        %v1899 = vld [vmem:[%s1898] sm:$0xf]
        %v1900 = vld [vmem:[%s1898 + $0x4] sm:$0xf]
        %v1909 = vunpack.c.l.b16 %v1673
        %v1910 = vunpack.c.l.b16 %v1675
        %v1911 = vunpack.c.l.b16 %v1677
        %v1912 = vunpack.c.l.b16 %v1679
        %v1913 = vunpack.c.l.b16 %v1681
        %v1914 = vunpack.c.l.b16 %v1683
        %v1915 = vunpack.c.l.b16 %v1685
        %v1916 = vunpack.c.l.b16 %v1687
        %v1917 = vpack.c.b16 %v1910, %v1909
        %v1918 = vpack.c.b16 %v1912, %v1911
        %v1919 = vpack.c.b16 %v1914, %v1913
        %v1920 = vpack.c.b16 %v1916, %v1915
        %v1923 = vunpack.c.l.b16 %v1899
        %v1924 = vunpack.c.l.b16 %v1900
        %v1925 = vpack.c.b16 %v1924, %v1923
        %v1928 = vsel %vm687, %v1917, 0
        %v1931 = vsel %vm687, %v1918, 0
        %v1934 = vsel %vm687, %v1919, 0
        %v1937 = vsel %vm687, %v1920, 0
        %1939 = vmatprep.subr.bf16.mxu0 0
        %1940 = vmatpush1.bf16.msra.mxu0 %v1925
        %1941 = vmatprep.subr.bf16.mxu0 0
        %1942 = vmatpush1.bf16.msra.mxu0 0
        %1943 = vmatprep.subr.bf16.mxu0 0
        %1944 = vmatpush1.bf16.msra.mxu0 0
        %1945 = vmatprep.subr.bf16.mxu0 0
        %1946 = vmatpush1.bf16.msra.mxu0 0
        %1947 = vmatprep.subr.bf16.mxu0 0
        %1948 = vmatpush1.bf16.msra.mxu0 0
        %1949 = vmatprep.subr.bf16.mxu0 0
        %1950 = vmatpush1.bf16.msra.mxu0 0
        %1951 = vmatprep.subr.bf16.mxu0 0
        %1952 = vmatpush1.bf16.msra.mxu0 0
        %1953 = vmatprep.subr.bf16.mxu0 0
        %1954 = vmatpush1.bf16.msra.mxu0 0
        %1955 = vmatprep.subr.bf16.mxu0 0
        %1956 = vmatpush1.bf16.msra.mxu0 0
        %1957 = vmatprep.subr.bf16.mxu0 0
        %1958 = vmatpush1.bf16.msra.mxu0 0
        %1959 = vmatprep.subr.bf16.mxu0 0
        %1960 = vmatpush1.bf16.msra.mxu0 0
        %1961 = vmatprep.subr.bf16.mxu0 0
        %1962 = vmatpush1.bf16.msra.mxu0 0
        %1963 = vmatprep.subr.bf16.mxu0 0
        %1964 = vmatpush1.bf16.msra.mxu0 0
        %1965 = vmatprep.subr.bf16.mxu0 0
        %1966 = vmatpush1.bf16.msra.mxu0 0
        %1967 = vmatprep.subr.bf16.mxu0 0
        %1968 = vmatpush1.bf16.msra.mxu0 0
        %1969 = vmatprep.subr.bf16.mxu0 0
        %1970 = vmatpush1.bf16.msra.mxu0 0
        %1971 = vmatprep.mubr.bf16.mxu0 0
        %1972 = vmatmul.mubr.bf16.gmra.mrb[0].mxu0 %v1928
        %v1973 = vpop.f32.mrb[0].mxu0
        %v1974 = vadd.f32 0.0, %v1973
        %v1975 = vpop.f32.mrb[0].mxu0
        %v1976 = vpop.f32.mrb[0].mxu0
        %v1977 = vadd.f32 0.0, %v1976
        %v1978 = vpop.f32.mrb[0].mxu0
        %1979 = vmatprep.mubr.bf16.mxu0 0
        %1980 = vmatmul.mubr.bf16.gmra.mrb[0].mxu0 %v1931
        %v1981 = vpop.f32.mrb[0].mxu0
        %v1982 = vadd.f32 0.0, %v1981
        %v1983 = vpop.f32.mrb[0].mxu0
        %v1984 = vpop.f32.mrb[0].mxu0
        %v1985 = vadd.f32 0.0, %v1984
        %v1986 = vpop.f32.mrb[0].mxu0
        %1987 = vmatprep.mubr.bf16.mxu0 0
        %1988 = vmatmul.mubr.bf16.gmra.mrb[0].mxu0 %v1934
        %v1989 = vpop.f32.mrb[0].mxu0
        %v1990 = vadd.f32 0.0, %v1989
        %v1991 = vpop.f32.mrb[0].mxu0
        %v1992 = vpop.f32.mrb[0].mxu0
        %v1993 = vadd.f32 0.0, %v1992
        %v1994 = vpop.f32.mrb[0].mxu0
        %1995 = vmatprep.mubr.bf16.mxu0 0
        %1996 = vmatmul.mubr.bf16.gmra.mrb[0].mxu0 %v1937
        %v1997 = vpop.f32.mrb[0].mxu0
        %v1998 = vadd.f32 0.0, %v1997
        %v1999 = vpop.f32.mrb[0].mxu0
        %v2000 = vpop.f32.mrb[0].mxu0
        %v2001 = vadd.f32 0.0, %v2000
        %v2002 = vpop.f32.mrb[0].mxu0
        %2003 = vdwg.mxu0
        %v2004 = vadd.f32 %v1890, %v1974
        %v2005 = vadd.f32 %v1891, %v1977
        %v2006 = vadd.f32 %v1892, %v1982
        %v2007 = vadd.f32 %v1893, %v1985
        %v2008 = vadd.f32 %v1894, %v1990
        %v2009 = vadd.f32 %v1895, %v1993
        %v2010 = vadd.f32 %v1896, %v1998
        %v2011 = vadd.f32 %v1897, %v2001
        %v2012 = vld [vmem:[%s1671 + $0x4] sm:$0xf]
        %v2013 = vld [vmem:[%s1671 + $0x8] sm:$0x1]
        %v2014 = vld [vmem:[%s1671 + $0x10] sm:$0xf]
        %v2015 = vld [vmem:[%s1671 + $0x14] sm:$0x1]
        %v2016 = vld [vmem:[%s1671 + $0x1c] sm:$0xf]
        %v2017 = vld [vmem:[%s1671 + $0x20] sm:$0x1]
        %v2018 = vld [vmem:[%s1671 + $0x28] sm:$0xf]
        %v2019 = vld [vmem:[%s1671 + $0x2c] sm:$0x1]
        %v2020 = vld [vmem:[%s1671 + $0x34] sm:$0xf]
        %v2021 = vld [vmem:[%s1671 + $0x38] sm:$0x1]
        %v2022 = vld [vmem:[%s1671 + $0x40] sm:$0xf]
        %v2023 = vld [vmem:[%s1671 + $0x44] sm:$0x1]
        %v2024 = vld [vmem:[%s1671 + $0x4c] sm:$0xf]
        %v2025 = vld [vmem:[%s1671 + $0x50] sm:$0x1]
        %v2026 = vld [vmem:[%s1671 + $0x58] sm:$0xf]
        %v2027 = vld [vmem:[%s1671 + $0x5c] sm:$0x1]
        %v2029 = vshrl.u32 %v2012, 16
        %v2031 = vrot.slane %v2029, 4
        %v2032 = vshll.u32 %v2012, 16
        %v2034 = vrot.slane %v2032, 5
        %v2035 = vor.u32 %v2031, %v2034
        %v2036 = vrot.slane %v2035, 4
        %v2038 = vshll.u32 %v2013, 16
        %v2040 = vrot.slane %v2038, 5
        %v2041 = vsel %vm878, %v2036, %v2040
        %v2043 = vshrl.u32 %v2014, 16
        %v2045 = vrot.slane %v2043, 4
        %v2046 = vshll.u32 %v2014, 16
        %v2048 = vrot.slane %v2046, 5
        %v2049 = vor.u32 %v2045, %v2048
        %v2050 = vrot.slane %v2049, 4
        %v2052 = vshll.u32 %v2015, 16
        %v2054 = vrot.slane %v2052, 5
        %v2055 = vsel %vm878, %v2050, %v2054
        %v2057 = vshrl.u32 %v2016, 16
        %v2059 = vrot.slane %v2057, 4
        %v2060 = vshll.u32 %v2016, 16
        %v2062 = vrot.slane %v2060, 5
        %v2063 = vor.u32 %v2059, %v2062
        %v2064 = vrot.slane %v2063, 4
        %v2066 = vshll.u32 %v2017, 16
        %v2068 = vrot.slane %v2066, 5
        %v2069 = vsel %vm878, %v2064, %v2068
        %v2071 = vshrl.u32 %v2018, 16
        %v2073 = vrot.slane %v2071, 4
        %v2074 = vshll.u32 %v2018, 16
        %v2076 = vrot.slane %v2074, 5
        %v2077 = vor.u32 %v2073, %v2076
        %v2078 = vrot.slane %v2077, 4
        %v2080 = vshll.u32 %v2019, 16
        %v2082 = vrot.slane %v2080, 5
        %v2083 = vsel %vm878, %v2078, %v2082
        %v2085 = vshrl.u32 %v2020, 16
        %v2087 = vrot.slane %v2085, 4
        %v2088 = vshll.u32 %v2020, 16
        %v2090 = vrot.slane %v2088, 5
        %v2091 = vor.u32 %v2087, %v2090
        %v2092 = vrot.slane %v2091, 4
        %v2094 = vshll.u32 %v2021, 16
        %v2096 = vrot.slane %v2094, 5
        %v2097 = vsel %vm878, %v2092, %v2096
        %v2099 = vshrl.u32 %v2022, 16
        %v2101 = vrot.slane %v2099, 4
        %v2102 = vshll.u32 %v2022, 16
        %v2104 = vrot.slane %v2102, 5
        %v2105 = vor.u32 %v2101, %v2104
        %v2106 = vrot.slane %v2105, 4
        %v2108 = vshll.u32 %v2023, 16
        %v2110 = vrot.slane %v2108, 5
        %v2111 = vsel %vm878, %v2106, %v2110
        %v2113 = vshrl.u32 %v2024, 16
        %v2115 = vrot.slane %v2113, 4
        %v2116 = vshll.u32 %v2024, 16
        %v2118 = vrot.slane %v2116, 5
        %v2119 = vor.u32 %v2115, %v2118
        %v2120 = vrot.slane %v2119, 4
        %v2122 = vshll.u32 %v2025, 16
        %v2124 = vrot.slane %v2122, 5
        %v2125 = vsel %vm878, %v2120, %v2124
        %v2127 = vshrl.u32 %v2026, 16
        %v2129 = vrot.slane %v2127, 4
        %v2130 = vshll.u32 %v2026, 16
        %v2132 = vrot.slane %v2130, 5
        %v2133 = vor.u32 %v2129, %v2132
        %v2134 = vrot.slane %v2133, 4
        %v2136 = vshll.u32 %v2027, 16
        %v2138 = vrot.slane %v2136, 5
        %v2139 = vsel %vm878, %v2134, %v2138
        %s2140 = scalar_lea.vmem %s3, 64
        %v2141 = vld [vmem:[%s2140] sm:$0xf]
        %v2142 = vld [vmem:[%s2140 + $0x4] sm:$0xf]
        %v2143 = vunpack.c.l.b16 %v2041
        %v2144 = vunpack.c.l.b16 %v2055
        %v2145 = vunpack.c.l.b16 %v2069
        %v2146 = vunpack.c.l.b16 %v2083
        %v2147 = vunpack.c.l.b16 %v2097
        %v2148 = vunpack.c.l.b16 %v2111
        %v2149 = vunpack.c.l.b16 %v2125
        %v2150 = vunpack.c.l.b16 %v2139
        %v2151 = vpack.c.b16 %v2144, %v2143
        %v2152 = vpack.c.b16 %v2146, %v2145
        %v2153 = vpack.c.b16 %v2148, %v2147
        %v2154 = vpack.c.b16 %v2150, %v2149
        %v2157 = vunpack.c.l.b16 %v2141
        %v2158 = vunpack.c.l.b16 %v2142
        %v2159 = vpack.c.b16 %v2158, %v2157
        %v2162 = vsel %vm687, %v2151, 0
        %v2165 = vsel %vm687, %v2152, 0
        %v2168 = vsel %vm687, %v2153, 0
        %v2171 = vsel %vm687, %v2154, 0
        %2173 = vmatprep.subr.bf16.mxu0 0
        %2174 = vmatpush1.bf16.msra.mxu0 %v2159
        %2175 = vmatprep.subr.bf16.mxu0 0
        %2176 = vmatpush1.bf16.msra.mxu0 0
        %2177 = vmatprep.subr.bf16.mxu0 0
        %2178 = vmatpush1.bf16.msra.mxu0 0
        %2179 = vmatprep.subr.bf16.mxu0 0
        %2180 = vmatpush1.bf16.msra.mxu0 0
        %2181 = vmatprep.subr.bf16.mxu0 0
        %2182 = vmatpush1.bf16.msra.mxu0 0
        %2183 = vmatprep.subr.bf16.mxu0 0
        %2184 = vmatpush1.bf16.msra.mxu0 0
        %2185 = vmatprep.subr.bf16.mxu0 0
        %2186 = vmatpush1.bf16.msra.mxu0 0
        %2187 = vmatprep.subr.bf16.mxu0 0
        %2188 = vmatpush1.bf16.msra.mxu0 0
        %2189 = vmatprep.subr.bf16.mxu0 0
        %2190 = vmatpush1.bf16.msra.mxu0 0
        %2191 = vmatprep.subr.bf16.mxu0 0
        %2192 = vmatpush1.bf16.msra.mxu0 0
        %2193 = vmatprep.subr.bf16.mxu0 0
        %2194 = vmatpush1.bf16.msra.mxu0 0
        %2195 = vmatprep.subr.bf16.mxu0 0
        %2196 = vmatpush1.bf16.msra.mxu0 0
        %2197 = vmatprep.subr.bf16.mxu0 0
        %2198 = vmatpush1.bf16.msra.mxu0 0
        %2199 = vmatprep.subr.bf16.mxu0 0
        %2200 = vmatpush1.bf16.msra.mxu0 0
        %2201 = vmatprep.subr.bf16.mxu0 0
        %2202 = vmatpush1.bf16.msra.mxu0 0
        %2203 = vmatprep.subr.bf16.mxu0 0
        %2204 = vmatpush1.bf16.msra.mxu0 0
        %2205 = vmatprep.mubr.bf16.mxu0 0
        %2206 = vmatmul.mubr.bf16.gmra.mrb[0].mxu0 %v2162
        %v2207 = vpop.f32.mrb[0].mxu0
        %v2208 = vadd.f32 0.0, %v2207
        %v2209 = vpop.f32.mrb[0].mxu0
        %v2210 = vpop.f32.mrb[0].mxu0
        %v2211 = vadd.f32 0.0, %v2210
        %v2212 = vpop.f32.mrb[0].mxu0
        %2213 = vmatprep.mubr.bf16.mxu0 0
        %2214 = vmatmul.mubr.bf16.gmra.mrb[0].mxu0 %v2165
        %v2215 = vpop.f32.mrb[0].mxu0
        %v2216 = vadd.f32 0.0, %v2215
        %v2217 = vpop.f32.mrb[0].mxu0
        %v2218 = vpop.f32.mrb[0].mxu0
        %v2219 = vadd.f32 0.0, %v2218
        %v2220 = vpop.f32.mrb[0].mxu0
        %2221 = vmatprep.mubr.bf16.mxu0 0
        %2222 = vmatmul.mubr.bf16.gmra.mrb[0].mxu0 %v2168
        %v2223 = vpop.f32.mrb[0].mxu0
        %v2224 = vadd.f32 0.0, %v2223
        %v2225 = vpop.f32.mrb[0].mxu0
        %v2226 = vpop.f32.mrb[0].mxu0
        %v2227 = vadd.f32 0.0, %v2226
        %v2228 = vpop.f32.mrb[0].mxu0
        %2229 = vmatprep.mubr.bf16.mxu0 0
        %2230 = vmatmul.mubr.bf16.gmra.mrb[0].mxu0 %v2171
        %v2231 = vpop.f32.mrb[0].mxu0
        %v2232 = vadd.f32 0.0, %v2231
        %v2233 = vpop.f32.mrb[0].mxu0
        %v2234 = vpop.f32.mrb[0].mxu0
        %v2235 = vadd.f32 0.0, %v2234
        %v2236 = vpop.f32.mrb[0].mxu0
        %2237 = vdwg.mxu0
        %v2238 = vadd.f32 %v2004, %v2208
        %v2239 = vadd.f32 %v2005, %v2211
        %v2240 = vadd.f32 %v2006, %v2216
        %v2241 = vadd.f32 %v2007, %v2219
        %v2242 = vadd.f32 %v2008, %v2224
        %v2243 = vadd.f32 %v2009, %v2227
        %v2244 = vadd.f32 %v2010, %v2232
        %v2245 = vadd.f32 %v2011, %v2235
        %v2246 = vld [vmem:[%s4] sm:$0x1]
        %v2248 = vlaneseq
        %v2249 = vshrl.u32 %v2248, 7
        %v2250 = vsub.s32 0, %v2249
        %v2251 = vrot.slane %v2246, %v2250
        %v2253 = vadd.f32 %v2238, %v2251
        %v2254 = vadd.f32 %v2239, %v2251
        %v2255 = vadd.f32 %v2240, %v2251
        %v2256 = vadd.f32 %v2241, %v2251
        %v2257 = vadd.f32 %v2242, %v2251
        %v2258 = vadd.f32 %v2243, %v2251
        %v2259 = vadd.f32 %v2244, %v2251
        %v2260 = vadd.f32 %v2245, %v2251
        %v2261 = vmax.f32 %v2253, 0.0
        %v2262 = vmax.f32 %v2254, 0.0
        %v2263 = vmax.f32 %v2255, 0.0
        %v2264 = vmax.f32 %v2256, 0.0
        %v2265 = vmax.f32 %v2257, 0.0
        %v2266 = vmax.f32 %v2258, 0.0
        %v2267 = vmax.f32 %v2259, 0.0
        %v2268 = vmax.f32 %v2260, 0.0
        %v2269 = vpack.c.bf16 %v2262, %v2261
        %v2270 = vpack.c.bf16 %v2264, %v2263
        %v2271 = vpack.c.bf16 %v2266, %v2265
        %v2272 = vpack.c.bf16 %v2268, %v2267
        %v2273 = vld [vmem:[%s5] sm:$0xf]
        %v2274 = vld [vmem:[%s5 + $0x4] sm:$0xf]
        %v2275 = vld [vmem:[%s6] sm:$0x1]
        %v2277 = vlaneseq
        %v2278 = vshrl.u32 %v2277, 7
        %v2279 = vsub.s32 0, %v2278
        %v2280 = vrot.slane %v2275, %v2279
        %v2284 = vunpack.c.l.b16 %v2273
        %v2285 = vunpack.c.l.b16 %v2274
        %v2286 = vpack.c.b16 %v2285, %v2284
        %v2289 = vsel %vm687, %v2269, 0
        %v2292 = vsel %vm687, %v2270, 0
        %v2295 = vsel %vm687, %v2271, 0
        %v2298 = vsel %vm687, %v2272, 0
        %2300 = vmatprep.subr.bf16.mxu0 0
        %2301 = vmatpush1.bf16.msra.mxu0 %v2286
        %2302 = vmatprep.subr.bf16.mxu0 0
        %2303 = vmatpush1.bf16.msra.mxu0 0
        %2304 = vmatprep.subr.bf16.mxu0 0
        %2305 = vmatpush1.bf16.msra.mxu0 0
        %2306 = vmatprep.subr.bf16.mxu0 0
        %2307 = vmatpush1.bf16.msra.mxu0 0
        %2308 = vmatprep.subr.bf16.mxu0 0
        %2309 = vmatpush1.bf16.msra.mxu0 0
        %2310 = vmatprep.subr.bf16.mxu0 0
        %2311 = vmatpush1.bf16.msra.mxu0 0
        %2312 = vmatprep.subr.bf16.mxu0 0
        %2313 = vmatpush1.bf16.msra.mxu0 0
        %2314 = vmatprep.subr.bf16.mxu0 0
        %2315 = vmatpush1.bf16.msra.mxu0 0
        %2316 = vmatprep.subr.bf16.mxu0 0
        %2317 = vmatpush1.bf16.msra.mxu0 0
        %2318 = vmatprep.subr.bf16.mxu0 0
        %2319 = vmatpush1.bf16.msra.mxu0 0
        %2320 = vmatprep.subr.bf16.mxu0 0
        %2321 = vmatpush1.bf16.msra.mxu0 0
        %2322 = vmatprep.subr.bf16.mxu0 0
        %2323 = vmatpush1.bf16.msra.mxu0 0
        %2324 = vmatprep.subr.bf16.mxu0 0
        %2325 = vmatpush1.bf16.msra.mxu0 0
        %2326 = vmatprep.subr.bf16.mxu0 0
        %2327 = vmatpush1.bf16.msra.mxu0 0
        %2328 = vmatprep.subr.bf16.mxu0 0
        %2329 = vmatpush1.bf16.msra.mxu0 0
        %2330 = vmatprep.subr.bf16.mxu0 0
        %2331 = vmatpush1.bf16.msra.mxu0 0
        %2332 = vmatprep.mubr.bf16.mxu0 0
        %2333 = vmatmul.mubr.bf16.gmra.mrb[0].mxu0 %v2289
        %v2334 = vpop.f32.mrb[0].mxu0
        %v2335 = vadd.f32 %v2280, %v2334
        %v2336 = vpop.f32.mrb[0].mxu0
        %v2337 = vpop.f32.mrb[0].mxu0
        %v2338 = vadd.f32 %v2280, %v2337
        %v2339 = vpop.f32.mrb[0].mxu0
        %2340 = vmatprep.mubr.bf16.mxu0 0
        %2341 = vmatmul.mubr.bf16.gmra.mrb[0].mxu0 %v2292
        %v2342 = vpop.f32.mrb[0].mxu0
        %v2343 = vadd.f32 %v2280, %v2342
        %v2344 = vpop.f32.mrb[0].mxu0
        %v2345 = vpop.f32.mrb[0].mxu0
        %v2346 = vadd.f32 %v2280, %v2345
        %v2347 = vpop.f32.mrb[0].mxu0
        %2348 = vmatprep.mubr.bf16.mxu0 0
        %2349 = vmatmul.mubr.bf16.gmra.mrb[0].mxu0 %v2295
        %v2350 = vpop.f32.mrb[0].mxu0
        %v2351 = vadd.f32 %v2280, %v2350
        %v2352 = vpop.f32.mrb[0].mxu0
        %v2353 = vpop.f32.mrb[0].mxu0
        %v2354 = vadd.f32 %v2280, %v2353
        %v2355 = vpop.f32.mrb[0].mxu0
        %2356 = vmatprep.mubr.bf16.mxu0 0
        %2357 = vmatmul.mubr.bf16.gmra.mrb[0].mxu0 %v2298
        %v2358 = vpop.f32.mrb[0].mxu0
        %v2359 = vadd.f32 %v2280, %v2358
        %v2360 = vpop.f32.mrb[0].mxu0
        %v2361 = vpop.f32.mrb[0].mxu0
        %v2362 = vadd.f32 %v2280, %v2361
        %v2363 = vpop.f32.mrb[0].mxu0
        %2364 = vdwg.mxu0
        %v2365 = vunpack.c.l.bf16 %v278
        %v2366 = vunpack.c.l.bf16 %v279
        %v2367 = vunpack.c.l.bf16 %v280
        %v2368 = vunpack.c.l.bf16 %v281
        %v2369 = vunpack.c.l.bf16 %v282
        %v2370 = vunpack.c.l.bf16 %v283
        %v2371 = vunpack.c.l.bf16 %v284
        %v2372 = vunpack.c.l.bf16 %v285
        %v2373 = vadd.f32 %v2335, %v2365
        %v2374 = vadd.f32 %v2338, %v2366
        %v2375 = vadd.f32 %v2343, %v2367
        %v2376 = vadd.f32 %v2346, %v2368
        %v2377 = vadd.f32 %v2351, %v2369
        %v2378 = vadd.f32 %v2354, %v2370
        %v2379 = vadd.f32 %v2359, %v2371
        %v2380 = vadd.f32 %v2362, %v2372
        %v2381 = vmax.f32 %v2373, 0.0
        %v2382 = vmax.f32 %v2374, 0.0
        %v2383 = vmax.f32 %v2375, 0.0
        %v2384 = vmax.f32 %v2376, 0.0
        %v2385 = vmax.f32 %v2377, 0.0
        %v2386 = vmax.f32 %v2378, 0.0
        %v2387 = vmax.f32 %v2379, 0.0
        %v2388 = vmax.f32 %v2380, 0.0
        %v2389 = vpack.c.bf16 %v2382, %v2381
        %v2390 = vpack.c.bf16 %v2384, %v2383
        %v2391 = vpack.c.bf16 %v2386, %v2385
        %v2392 = vpack.c.bf16 %v2388, %v2387
        %v2397 = vunpack.c.l.b16 %v2389
        %v2398 = vunpack.c.h.b16 %v2389
        %v2399 = vunpack.c.l.b16 %v2390
        %v2400 = vunpack.c.h.b16 %v2390
        %v2401 = vunpack.c.l.b16 %v2391
        %v2402 = vunpack.c.h.b16 %v2391
        %v2403 = vunpack.c.l.b16 %v2392
        %v2404 = vunpack.c.h.b16 %v2392
        %v2405 = vpack.c.b16 %v2397, %v2397
        %v2406 = vpack.c.b16 %v2398, %v2398
        %v2407 = vpack.c.b16 %v2399, %v2399
        %v2408 = vpack.c.b16 %v2400, %v2400
        %v2409 = vpack.c.b16 %v2401, %v2401
        %v2410 = vpack.c.b16 %v2402, %v2402
        %v2411 = vpack.c.b16 %v2403, %v2403
        %v2412 = vpack.c.b16 %v2404, %v2404
        %vm2421 = vcmask 519168
        %2422 = vst.msk [vmem:[%s271] sm:$0xf] %vm2421, %v2405
        %2423 = vst.msk [vmem:[%s271 + $0x4] sm:$0xf] %vm2421, %v2406
        %2424 = vst.msk [vmem:[%s271 + $0x8] sm:$0xf] %vm2421, %v2407
        %2425 = vst.msk [vmem:[%s271 + $0xc] sm:$0xf] %vm2421, %v2408
        %2426 = vst.msk [vmem:[%s271 + $0x10] sm:$0xf] %vm2421, %v2409
        %2427 = vst.msk [vmem:[%s271 + $0x14] sm:$0xf] %vm2421, %v2410
        %2428 = vst.msk [vmem:[%s271 + $0x18] sm:$0xf] %vm2421, %v2411
        %2429 = vst.msk [vmem:[%s271 + $0x1c] sm:$0xf] %vm2421, %v2412
        %s2430 = sand.u32 %s181, 1
        %s2431 = scalar_lea.sflag [#allocation4], %s2430
        %s2432 = sand.u32 %s181, 1
        %s2433 = smul.addr %s2432, 32
        %s2434 = scalar_lea.vmem [#allocation3], %s2433
        // Predicated region
        $region49: #{bottleneck_forward.1} parent=47 // pred_check
          %p2435 = pneg %p191
        $region50: #{bottleneck_forward.1} parent=47 // pred_check_branch
          %2437 = sbr.rel (%p2435) target = $region52
        $region51: #{bottleneck_forward.1} parent=47 // pred_region
          %s2439 = ssub.s32 512, 512
          %2440 = vsyncadd %s2431, %s2439
          %s2441 = smul.addr %s21, 8
          %s2442 = smul.addr %s2441, 64
          %s2443 = scalar_lea.hbm %s7, %s2442
          %s2444 = sshll.u32 %s2434, 4
          %s2445 = int_to_ptr.vmem [resolvable:$true] %s2444
          %2450 = dma.vmem_to_hbm [thread:$0]  %s2445, 512, %s2443, %s2431, 64, 64, 4
        $region52: #{bottleneck_forward.1} parent=47 // pred_fallthru
          _
      $region48: #{bottleneck_forward.1} parent=5 // pred_fallthru
        _
      %p2451 = scmp.le.s32.totalorder 2, %s16
      // Predicated region
      $region53: #{bottleneck_forward.1} parent=5 // pred_check
        %p2452 = pneg %p2451
      $region54: #{bottleneck_forward.1} parent=5 // pred_check_branch
        %2454 = sbr.rel (%p2452) target = $region56
      $region55: #{bottleneck_forward.1} parent=5 // pred_region
        %s2455 = ssub.s32 %s16, 2
        // Predicated region
        $region57: #{bottleneck_forward.1} parent=55 // pred_check
          %p2456 = pneg %p197
        $region58: #{bottleneck_forward.1} parent=55 // pred_check_branch
          %2458 = sbr.rel (%p2456) target = $region60
        $region59: #{bottleneck_forward.1} parent=55 // pred_region
          %s2459 = sand.u32 %s182, 1
          %s2460 = scalar_lea.sflag [#allocation4], %s2459
          %s2461 = sand.u32 %s182, 1
          %s2462 = smul.addr %s2461, 32
          %s2463 = scalar_lea.vmem [#allocation3], %s2462
          %2464 = dma.done %s2460, 512
        $region60: #{bottleneck_forward.1} parent=55 // pred_fallthru
          _
      $region56: #{bottleneck_forward.1} parent=5 // pred_fallthru
        _
    $region6: #{bottleneck_forward.1} parent=1 // loop_footer
      %s20 = sadd.s32 1, %s16
    $region7: #{bottleneck_forward.1} parent=1 // loop_footer_branch
      %15 = sbr.rel target = $region3
    $region8: #{bottleneck_forward.1} parent=1 // loop_exit
      _
    %2465 = vsyncpa [#allocation4], 1
    %s2466 = scalar_lea.sflag [#allocation4], 1
    %2467 = vsyncpa %s2466, 1

</llo_original>
